<compile_context>
chip_gen: v5e
topology: v5e:2x2
jax: 0.10.0
libtpu: 0.0.40
codegen_flags: <defaults>
</compile_context>

<pallas_src>
import jax
import jax.numpy as jnp
from jax.experimental import pallas as pl
from jax.experimental.pallas import tpu as pltpu


def _round_up(x, m):
    return (x + m - 1) // m * m


def _make_kernel(W, L1, L2, cout_p, b_tile, compute_dtype):
    """Per-grid-step kernel over b_tile images.

    Flat-index identities (q = h*W + w, row-major):
      3x3 valid-conv output at q reads input at q + dy*W + dx   (dy, dx in 0..2)
      crop-by-2 identity at q reads input at q + 2*W + 2
    Only q with h <= H-5, w <= W-5 survive the wrapper crop; every such position reads
    in-bounds, non-wrapped data, so the length-L1 / length-L2 prefixes are exact
    wherever the output is kept.
    """
    offs = [dy * W + dx for dy in range(3) for dx in range(3)]
    shift_id = 2 * W + 2

    def dot(a, b):
        return jax.lax.dot_general(a, b, (((1,), (0,)), ((), ())),
                                   preferred_element_type=jnp.float32)

    def kernel(x_ref, w1_ref, w2_ref, wd_ref, sh_ref, o_ref):
        # Per-channel BN shifts broadcast once (hoisted out of the per-image loop;
        # JAX does not CSE broadcast_in_dim).
        b1 = jnp.broadcast_to(sh_ref[0], (cout_p, L1))
        b2 = jnp.broadcast_to(sh_ref[1], (cout_p, L2))
        bd = jnp.broadcast_to(sh_ref[2], (cout_p, L2))
        wd = wd_ref[...]

        for b in range(b_tile):                      # static unroll over images in block
            x = x_ref[b]                             # (Cin, H*W), compute dtype, lane-dense

            # conv1 (+ folded bn1 scale): 9 accumulating shift-matmuls, no scratch.
            acc = b1
            for t, off in enumerate(offs):
                acc = acc + dot(w1_ref[t], x[:, off:off + L1])
            y = jnp.maximum(acc, 0.0).astype(compute_dtype)      # bn1 shift + relu (f32)

            # conv2 (+ folded bn2 scale).
            acc = b2
            for t, off in enumerate(offs):
                acc = acc + dot(w2_ref[t], y[:, off:off + L2])

            # identity branch: crop-by-2 == flat shift 2W+2, then 1x1 conv (+ bn_d).
            idn = bd + dot(wd, x[:, shift_id:shift_id + L2])

            # residual add + relu; store only the L2 valid flat columns (lane-masked).
            o_ref[b, :, :L2] = jnp.maximum(acc + idn, 0.0).astype(o_ref.dtype)

    return kernel


def _fold_bn(gamma, beta, mean, var, eps=1e-5):
    """Eval-mode BatchNorm as per-channel (scale, shift)."""
    scale = gamma / jnp.sqrt(var + eps)
    shift = beta - mean * scale
    return scale, shift


def _pack_conv3x3(w_oihw, scale, cout_p, dtype):
    """(Cout, Cin, 3, 3) OIHW with BN scale folded per out-channel -> (9, Cout_p, Cin).
    Tap index t = dy*3 + dx matches offs = dy*W + dx in the kernel."""
    cout, cin = w_oihw.shape[:2]
    w = w_oihw * scale[:, None, None, None]
    w9 = jnp.transpose(w, (2, 3, 0, 1)).reshape(9, cout, cin)
    return (jnp.zeros((9, cout_p, cin), jnp.float32).at[:, :cout, :].set(w9)).astype(dtype)


def _pick_b_tile(N, per_image_block_bytes, budget_bytes=16 << 20):
    """Largest divisor of N that keeps >=4 grid steps when N allows (pipeline depth and
    the v7x 2-TC batch split) while keeping double-buffered in+out blocks under budget."""
    best = 1
    for d in range(1, max(1, N // 4) + 1):
        if N % d == 0 and 2 * d * per_image_block_bytes <= budget_bytes:
            best = d
    return best


def crop_res_block(x_nchw, params, compute_dtype=jnp.bfloat16, b_tile=None):
    """x_nchw: (N, Cin, H, W) f32 -> (N, Cout, H-4, W-4) f32 (NCHW, eval-mode BN).

    compute_dtype: MXU-operand / activation-transfer dtype.  bf16 (default) is the
    native fast path on v5e/v6e/v7x; f32 is the stricter multi-pass mode.  BN, ReLU and
    matmul accumulation are always f32.
    """
    # TODO(synk): groups > 1 (grouped conv) not implemented; module default groups=1.
    w1_oihw, bn1, w2_oihw, bn2, wd_oihw, bnd = params
    N, Cin, H, W = x_nchw.shape
    Cout = w1_oihw.shape[0]
    Ho, Wo = H - 4, W - 4
    S = 2 * W + 2
    L = H * W                         # flat length of x
    L1 = L - S                        # conv1 output flat length
    L2 = L - 2 * S                    # conv2 / identity / output flat length
    cout_p = _round_up(Cout, 8)       # f32 sublane tile for accumulators / output rows
    HoW = Ho * W                      # = L2 + 4; valid data occupies the first L2 lanes

    # NCHW -> (N, Cin, H*W): the reshape is free (contiguous); the cast to bf16 halves
    # the HBM->VMEM DMA bytes.  No channel padding needed (full-dim blocks are legal and
    # the kernel never takes unaligned sublane sub-slices of the channel axis).
    x_flat = x_nchw.reshape(N, Cin, L).astype(compute_dtype)

    s1, b1 = _fold_bn(*bn1)
    s2, b2 = _fold_bn(*bn2)
    sd, bd = _fold_bn(*bnd)
    w1 = _pack_conv3x3(w1_oihw, s1, cout_p, compute_dtype)            # (9, Cout_p, Cin)
    w2 = _pack_conv3x3(w2_oihw, s2, cout_p, compute_dtype)            # (9, Cout_p, Cout_p)... see below
    wd = (jnp.zeros((cout_p, Cin), jnp.float32)
          .at[:Cout, :].set(wd_oihw[:, :, 0, 0] * sd[:, None])).astype(compute_dtype)
    # The three per-channel BN shifts travel as ONE small array (1 DMA instead of 6).
    sh = jnp.zeros((3, cout_p, 1), jnp.float32)
    sh = sh.at[0, :Cout, 0].set(b1).at[1, :Cout, 0].set(b2).at[2, :Cout, 0].set(bd)
    # conv2 consumes the (cout_p, L1) intermediate, so pad its input-channel axis too.
    if w2.shape[2] != cout_p:
        w2 = jnp.pad(w2, ((0, 0), (0, 0), (0, cout_p - w2.shape[2])))

    in_item = jnp.dtype(compute_dtype).itemsize
    per_image_blk = Cin * L * in_item + cout_p * HoW * 4
    if b_tile is None:
        b_tile = _pick_b_tile(N, per_image_blk)
    assert N % b_tile == 0, (N, b_tile)

    # VMEM budget from actual buffer sizes (double-buffered blocks + weights + live
    # per-image intermediates), clamped to the chip's physical VMEM.
    w_bytes = (w1.size + w2.size + wd.size) * in_item + sh.size * 4
    live = cout_p * (L1 + 2 * L2) * 4 + cout_p * L1 * in_item + Cin * L * in_item
    est = 2 * (b_tile * per_image_blk + w_bytes) + live + (4 << 20)
    try:
        phys = int(pltpu.get_tpu_info().vmem_capacity_bytes)
    except Exception:
        phys = 64 << 20               # v7x per-core VMEM: smallest current generation
    vmem_limit = int(max(16 << 20, min(est, phys - (8 << 20))))

    # TODO(synk): for very large H*W additionally tile the flat spatial axis (extra grid
    # axis with a 2-row halo per chunk) so per-step blocks stay within v7x's 64 MiB VMEM.

    kernel = _make_kernel(W, L1, L2, cout_p, b_tile, compute_dtype)

    def _full_spec(a):
        nd = a.ndim
        return pl.BlockSpec(a.shape, lambda n: (0,) * nd)

    out_flat = pl.pallas_call(
        kernel,
        out_shape=jax.ShapeDtypeStruct((N, cout_p, HoW), jnp.float32),
        grid=(N // b_tile,),
        in_specs=[
            pl.BlockSpec((b_tile, Cin, L), lambda n: (n, 0, 0)),   # b_tile images / step
            _full_spec(w1), _full_spec(w2), _full_spec(wd), _full_spec(sh),
        ],
        out_specs=pl.BlockSpec((b_tile, cout_p, HoW), lambda n: (n, 0, 0)),
        compiler_params=pltpu.CompilerParams(
            dimension_semantics=("parallel",),   # v7x: the two TCs split the batch grid
            vmem_limit_bytes=vmem_limit,
        ),
    )(x_flat, w1, w2, wd, sh)

    # (N, Cout_p, Ho*W) -> (N, Cout, Ho, Wo): the reshape is layout-free; only the 4
    # never-written tail columns per image (all land in cropped w >= Wo positions) and
    # any padded channels are sliced away.  No extra pad pass over the output.
    return out_flat.reshape(N, cout_p, Ho, W)[:, :Cout, :, :Wo]


def _reference(x_nchw, params):
    """Pure-JAX reference (same math, XLA convs at HIGHEST precision)."""
    w1_oihw, bn1, w2_oihw, bn2, wd_oihw, bnd = params
    hp = jax.lax.Precision.HIGHEST

    def fold(gamma, beta, mean, var, eps=1e-5):
        scale = gamma / jnp.sqrt(var + eps)
        shift = beta - mean * scale
        return scale.reshape(1, 1, -1), shift.reshape(1, 1, -1)

    dn = ('NHWC', 'HWIO', 'NHWC')
    x = jnp.transpose(x_nchw, (0, 2, 3, 1)).astype(jnp.float32)
    w1 = jnp.transpose(w1_oihw, (2, 3, 1, 0))
    w2 = jnp.transpose(w2_oihw, (2, 3, 1, 0))
    wd = jnp.transpose(wd_oihw[:, :, 0, 0], (1, 0))
    s1, b1 = fold(*bn1)
    s2, b2 = fold(*bn2)
    sd, bd = fold(*bnd)

    y = jax.lax.conv_general_dilated(x, w1, (1, 1), 'VALID',
                                     dimension_numbers=dn, precision=hp)
    y = jnp.maximum(y * s1 + b1, 0.0)
    y = jax.lax.conv_general_dilated(y, w2, (1, 1), 'VALID',
                                     dimension_numbers=dn, precision=hp)
    y = y * s2 + b2
    ident = x[:, 2:-2, 2:-2, :]
    ident = jnp.einsum('nhwc,co->nhwo', ident, wd, precision=hp) * sd + bd
    out = jnp.maximum(y + ident, 0.0)
    return jnp.transpose(out, (0, 3, 1, 2))


def _make_params(key, in_channels, out_channels):
    ks = jax.random.split(key, 16)

    def bn_params(k0, k1, k2, k3, c):
        gamma = jax.random.uniform(k0, (c,), jnp.float32, 0.5, 1.5)
        beta = 0.1 * jax.random.normal(k1, (c,), jnp.float32)
        mean = 0.1 * jax.random.normal(k2, (c,), jnp.float32)
        var = jax.random.uniform(k3, (c,), jnp.float32, 0.5, 1.5)
        return (gamma, beta, mean, var)

    w1 = 0.2 * jax.random.normal(ks[0], (out_channels, in_channels, 3, 3), jnp.float32)
    w2 = 0.2 * jax.random.normal(ks[1], (out_channels, out_channels, 3, 3), jnp.float32)
    wd = 0.2 * jax.random.normal(ks[2], (out_channels, in_channels, 1, 1), jnp.float32)
    bn1 = bn_params(ks[3], ks[4], ks[5], ks[6], out_channels)
    bn2 = bn_params(ks[7], ks[8], ks[9], ks[10], out_channels)
    bnd = bn_params(ks[11], ks[12], ks[13], ks[14], out_channels)
    return (w1, bn1, w2, bn2, wd, bnd)


if __name__ == "__main__":
    N, Cin, Cout, H, W = 2, 4, 8, 16, 16
    key = jax.random.PRNGKey(0)
    kx, kp = jax.random.split(key)
    x = jax.random.normal(kx, (N, Cin, H, W), jnp.float32)
    params = _make_params(kp, Cin, Cout)

    ref = jax.block_until_ready(_reference(x, params))

    # Default path: bf16 MXU operands / bf16 activation transfer, f32 accumulation.
    out = jax.block_until_ready(crop_res_block(x, params))
    assert out.shape == (N, Cout, H - 4, W - 4), out.shape
    if not jnp.allclose(out, ref, rtol=5e-2, atol=5e-2):
        raise AssertionError("Pallas kernel (bf16) output does not match reference")

    # Opt-in f32 MXU-operand path (tighter check).
    out_f32 = jax.block_until_ready(
        crop_res_block(x, params, compute_dtype=jnp.float32))
    if not jnp.allclose(out_f32, ref, rtol=1e-2, atol=1e-2):
        raise AssertionError("Pallas kernel (f32) output does not match reference")

    print("KERNEL_OK")
</pallas_src>

<mosaic_0001>
module attributes {stable_mosaic.version = 11 : i64} {
  func.func @kernel(%arg0: i32, %arg1: memref<1x4x256xbf16, #tpu.memory_space<vmem>>, %arg2: memref<9x8x4xbf16, #tpu.memory_space<vmem>>, %arg3: memref<9x8x8xbf16, #tpu.memory_space<vmem>>, %arg4: memref<8x4xbf16, #tpu.memory_space<vmem>>, %arg5: memref<3x8x1xf32, #tpu.memory_space<vmem>>, %arg6: memref<1x8x192xf32, #tpu.memory_space<vmem>>) attributes {dimension_semantics = [#tpu.dimension_semantics<parallel>], iteration_bounds = array<i64: 2>, scalar_prefetch = 0 : i64, scratch_operands = 0 : i64, tpu.core_type = #tpu.core_type<tc>, window_params = [{transform_indices = @transform_0, window_bounds = array<i64: 1, 4, 256>}, {pipeline_mode = #tpu.pipeline_mode<synchronous>, transform_indices = @transform_1, window_bounds = array<i64: 9, 8, 4>}, {pipeline_mode = #tpu.pipeline_mode<synchronous>, transform_indices = @transform_2, window_bounds = array<i64: 9, 8, 8>}, {pipeline_mode = #tpu.pipeline_mode<synchronous>, transform_indices = @transform_3, window_bounds = array<i64: 8, 4>}, {pipeline_mode = #tpu.pipeline_mode<synchronous>, transform_indices = @transform_4, window_bounds = array<i64: 3, 8, 1>}, {transform_indices = @transform_5, window_bounds = array<i64: 1, 8, 192>}]} {
    %c0 = arith.constant 0 : index
    %c0_0 = arith.constant 0 : index
    %c0_1 = arith.constant 0 : index
    %0 = vector.load %arg5[%c0, %c0_0, %c0_1] : memref<3x8x1xf32, #tpu.memory_space<vmem>>, vector<1x8x1xf32>
    %1 = vector.shape_cast %0 : vector<1x8x1xf32> to vector<8x1xf32>
    %2 = vector.shape_cast %1 : vector<8x1xf32> to vector<8x1xf32>
    %3 = vector.broadcast %2 : vector<8x1xf32> to vector<8x222xf32>
    %c1 = arith.constant 1 : index
    %c0_2 = arith.constant 0 : index
    %c0_3 = arith.constant 0 : index
    %4 = vector.load %arg5[%c1, %c0_2, %c0_3] : memref<3x8x1xf32, #tpu.memory_space<vmem>>, vector<1x8x1xf32>
    %5 = vector.shape_cast %4 : vector<1x8x1xf32> to vector<8x1xf32>
    %6 = vector.shape_cast %5 : vector<8x1xf32> to vector<8x1xf32>
    %7 = vector.broadcast %6 : vector<8x1xf32> to vector<8x188xf32>
    %c2 = arith.constant 2 : index
    %c0_4 = arith.constant 0 : index
    %c0_5 = arith.constant 0 : index
    %8 = vector.load %arg5[%c2, %c0_4, %c0_5] : memref<3x8x1xf32, #tpu.memory_space<vmem>>, vector<1x8x1xf32>
    %9 = vector.shape_cast %8 : vector<1x8x1xf32> to vector<8x1xf32>
    %10 = vector.shape_cast %9 : vector<8x1xf32> to vector<8x1xf32>
    %11 = vector.broadcast %10 : vector<8x1xf32> to vector<8x188xf32>
    %c0_6 = arith.constant 0 : index
    %c0_7 = arith.constant 0 : index
    %12 = vector.load %arg4[%c0_6, %c0_7] : memref<8x4xbf16, #tpu.memory_space<vmem>>, vector<8x4xbf16>
    %c0_8 = arith.constant 0 : index
    %c0_9 = arith.constant 0 : index
    %c0_10 = arith.constant 0 : index
    %13 = vector.load %arg1[%c0_8, %c0_9, %c0_10] : memref<1x4x256xbf16, #tpu.memory_space<vmem>>, vector<1x4x256xbf16>
    %14 = vector.shape_cast %13 : vector<1x4x256xbf16> to vector<4x256xbf16>
    %c0_11 = arith.constant 0 : index
    %c0_12 = arith.constant 0 : index
    %c0_13 = arith.constant 0 : index
    %15 = vector.load %arg2[%c0_11, %c0_12, %c0_13] : memref<9x8x4xbf16, #tpu.memory_space<vmem>>, vector<1x8x4xbf16>
    %16 = vector.shape_cast %15 : vector<1x8x4xbf16> to vector<8x4xbf16>
    %17 = vector.extract_strided_slice %14 {offsets = [0, 0], sizes = [4, 222], strides = [1, 1]} : vector<4x256xbf16> to vector<4x222xbf16>
    %cst = arith.constant dense<0.000000e+00> : vector<8x222xf32>
    %18 = tpu.matmul %16, %17, %cst {dimension_numbers = #tpu.dot_dimension_numbers<[1], [0], [0], [1], [0, 0, 1, 1], [], []>} : vector<8x4xbf16>, vector<4x222xbf16>, vector<8x222xf32> -> vector<8x222xf32>
    %19 = arith.addf %3, %18 : vector<8x222xf32>
    %c1_14 = arith.constant 1 : index
    %c0_15 = arith.constant 0 : index
    %c0_16 = arith.constant 0 : index
    %20 = vector.load %arg2[%c1_14, %c0_15, %c0_16] : memref<9x8x4xbf16, #tpu.memory_space<vmem>>, vector<1x8x4xbf16>
    %21 = vector.shape_cast %20 : vector<1x8x4xbf16> to vector<8x4xbf16>
    %22 = vector.extract_strided_slice %14 {offsets = [0, 1], sizes = [4, 222], strides = [1, 1]} : vector<4x256xbf16> to vector<4x222xbf16>
    %cst_17 = arith.constant dense<0.000000e+00> : vector<8x222xf32>
    %23 = tpu.matmul %21, %22, %cst_17 {dimension_numbers = #tpu.dot_dimension_numbers<[1], [0], [0], [1], [0, 0, 1, 1], [], []>} : vector<8x4xbf16>, vector<4x222xbf16>, vector<8x222xf32> -> vector<8x222xf32>
    %24 = arith.addf %19, %23 : vector<8x222xf32>
    %c2_18 = arith.constant 2 : index
    %c0_19 = arith.constant 0 : index
    %c0_20 = arith.constant 0 : index
    %25 = vector.load %arg2[%c2_18, %c0_19, %c0_20] : memref<9x8x4xbf16, #tpu.memory_space<vmem>>, vector<1x8x4xbf16>
    %26 = vector.shape_cast %25 : vector<1x8x4xbf16> to vector<8x4xbf16>
    %27 = vector.extract_strided_slice %14 {offsets = [0, 2], sizes = [4, 222], strides = [1, 1]} : vector<4x256xbf16> to vector<4x222xbf16>
    %cst_21 = arith.constant dense<0.000000e+00> : vector<8x222xf32>
    %28 = tpu.matmul %26, %27, %cst_21 {dimension_numbers = #tpu.dot_dimension_numbers<[1], [0], [0], [1], [0, 0, 1, 1], [], []>} : vector<8x4xbf16>, vector<4x222xbf16>, vector<8x222xf32> -> vector<8x222xf32>
    %29 = arith.addf %24, %28 : vector<8x222xf32>
    %c3 = arith.constant 3 : index
    %c0_22 = arith.constant 0 : index
    %c0_23 = arith.constant 0 : index
    %30 = vector.load %arg2[%c3, %c0_22, %c0_23] : memref<9x8x4xbf16, #tpu.memory_space<vmem>>, vector<1x8x4xbf16>
    %31 = vector.shape_cast %30 : vector<1x8x4xbf16> to vector<8x4xbf16>
    %32 = vector.extract_strided_slice %14 {offsets = [0, 16], sizes = [4, 222], strides = [1, 1]} : vector<4x256xbf16> to vector<4x222xbf16>
    %cst_24 = arith.constant dense<0.000000e+00> : vector<8x222xf32>
    %33 = tpu.matmul %31, %32, %cst_24 {dimension_numbers = #tpu.dot_dimension_numbers<[1], [0], [0], [1], [0, 0, 1, 1], [], []>} : vector<8x4xbf16>, vector<4x222xbf16>, vector<8x222xf32> -> vector<8x222xf32>
    %34 = arith.addf %29, %33 : vector<8x222xf32>
    %c4 = arith.constant 4 : index
    %c0_25 = arith.constant 0 : index
    %c0_26 = arith.constant 0 : index
    %35 = vector.load %arg2[%c4, %c0_25, %c0_26] : memref<9x8x4xbf16, #tpu.memory_space<vmem>>, vector<1x8x4xbf16>
    %36 = vector.shape_cast %35 : vector<1x8x4xbf16> to vector<8x4xbf16>
    %37 = vector.extract_strided_slice %14 {offsets = [0, 17], sizes = [4, 222], strides = [1, 1]} : vector<4x256xbf16> to vector<4x222xbf16>
    %cst_27 = arith.constant dense<0.000000e+00> : vector<8x222xf32>
    %38 = tpu.matmul %36, %37, %cst_27 {dimension_numbers = #tpu.dot_dimension_numbers<[1], [0], [0], [1], [0, 0, 1, 1], [], []>} : vector<8x4xbf16>, vector<4x222xbf16>, vector<8x222xf32> -> vector<8x222xf32>
    %39 = arith.addf %34, %38 : vector<8x222xf32>
    %c5 = arith.constant 5 : index
    %c0_28 = arith.constant 0 : index
    %c0_29 = arith.constant 0 : index
    %40 = vector.load %arg2[%c5, %c0_28, %c0_29] : memref<9x8x4xbf16, #tpu.memory_space<vmem>>, vector<1x8x4xbf16>
    %41 = vector.shape_cast %40 : vector<1x8x4xbf16> to vector<8x4xbf16>
    %42 = vector.extract_strided_slice %14 {offsets = [0, 18], sizes = [4, 222], strides = [1, 1]} : vector<4x256xbf16> to vector<4x222xbf16>
    %cst_30 = arith.constant dense<0.000000e+00> : vector<8x222xf32>
    %43 = tpu.matmul %41, %42, %cst_30 {dimension_numbers = #tpu.dot_dimension_numbers<[1], [0], [0], [1], [0, 0, 1, 1], [], []>} : vector<8x4xbf16>, vector<4x222xbf16>, vector<8x222xf32> -> vector<8x222xf32>
    %44 = arith.addf %39, %43 : vector<8x222xf32>
    %c6 = arith.constant 6 : index
    %c0_31 = arith.constant 0 : index
    %c0_32 = arith.constant 0 : index
    %45 = vector.load %arg2[%c6, %c0_31, %c0_32] : memref<9x8x4xbf16, #tpu.memory_space<vmem>>, vector<1x8x4xbf16>
    %46 = vector.shape_cast %45 : vector<1x8x4xbf16> to vector<8x4xbf16>
    %47 = vector.extract_strided_slice %14 {offsets = [0, 32], sizes = [4, 222], strides = [1, 1]} : vector<4x256xbf16> to vector<4x222xbf16>
    %cst_33 = arith.constant dense<0.000000e+00> : vector<8x222xf32>
    %48 = tpu.matmul %46, %47, %cst_33 {dimension_numbers = #tpu.dot_dimension_numbers<[1], [0], [0], [1], [0, 0, 1, 1], [], []>} : vector<8x4xbf16>, vector<4x222xbf16>, vector<8x222xf32> -> vector<8x222xf32>
    %49 = arith.addf %44, %48 : vector<8x222xf32>
    %c7 = arith.constant 7 : index
    %c0_34 = arith.constant 0 : index
    %c0_35 = arith.constant 0 : index
    %50 = vector.load %arg2[%c7, %c0_34, %c0_35] : memref<9x8x4xbf16, #tpu.memory_space<vmem>>, vector<1x8x4xbf16>
    %51 = vector.shape_cast %50 : vector<1x8x4xbf16> to vector<8x4xbf16>
    %52 = vector.extract_strided_slice %14 {offsets = [0, 33], sizes = [4, 222], strides = [1, 1]} : vector<4x256xbf16> to vector<4x222xbf16>
    %cst_36 = arith.constant dense<0.000000e+00> : vector<8x222xf32>
    %53 = tpu.matmul %51, %52, %cst_36 {dimension_numbers = #tpu.dot_dimension_numbers<[1], [0], [0], [1], [0, 0, 1, 1], [], []>} : vector<8x4xbf16>, vector<4x222xbf16>, vector<8x222xf32> -> vector<8x222xf32>
    %54 = arith.addf %49, %53 : vector<8x222xf32>
    %c8 = arith.constant 8 : index
    %c0_37 = arith.constant 0 : index
    %c0_38 = arith.constant 0 : index
    %55 = vector.load %arg2[%c8, %c0_37, %c0_38] : memref<9x8x4xbf16, #tpu.memory_space<vmem>>, vector<1x8x4xbf16>
    %56 = vector.shape_cast %55 : vector<1x8x4xbf16> to vector<8x4xbf16>
    %57 = vector.extract_strided_slice %14 {offsets = [0, 34], sizes = [4, 222], strides = [1, 1]} : vector<4x256xbf16> to vector<4x222xbf16>
    %cst_39 = arith.constant dense<0.000000e+00> : vector<8x222xf32>
    %58 = tpu.matmul %56, %57, %cst_39 {dimension_numbers = #tpu.dot_dimension_numbers<[1], [0], [0], [1], [0, 0, 1, 1], [], []>} : vector<8x4xbf16>, vector<4x222xbf16>, vector<8x222xf32> -> vector<8x222xf32>
    %59 = arith.addf %54, %58 : vector<8x222xf32>
    %cst_40 = arith.constant 0.000000e+00 : f32
    %60 = vector.broadcast %cst_40 : f32 to vector<8x222xf32>
    %61 = arith.maximumf %59, %60 : vector<8x222xf32>
    %62 = arith.truncf %61 : vector<8x222xf32> to vector<8x222xbf16>
    %c0_41 = arith.constant 0 : index
    %c0_42 = arith.constant 0 : index
    %c0_43 = arith.constant 0 : index
    %63 = vector.load %arg3[%c0_41, %c0_42, %c0_43] : memref<9x8x8xbf16, #tpu.memory_space<vmem>>, vector<1x8x8xbf16>
    %64 = vector.shape_cast %63 : vector<1x8x8xbf16> to vector<8x8xbf16>
    %65 = vector.extract_strided_slice %62 {offsets = [0, 0], sizes = [8, 188], strides = [1, 1]} : vector<8x222xbf16> to vector<8x188xbf16>
    %cst_44 = arith.constant dense<0.000000e+00> : vector<8x188xf32>
    %66 = tpu.matmul %64, %65, %cst_44 {dimension_numbers = #tpu.dot_dimension_numbers<[1], [0], [0], [1], [0, 0, 1, 1], [], []>} : vector<8x8xbf16>, vector<8x188xbf16>, vector<8x188xf32> -> vector<8x188xf32>
    %67 = arith.addf %7, %66 : vector<8x188xf32>
    %c1_45 = arith.constant 1 : index
    %c0_46 = arith.constant 0 : index
    %c0_47 = arith.constant 0 : index
    %68 = vector.load %arg3[%c1_45, %c0_46, %c0_47] : memref<9x8x8xbf16, #tpu.memory_space<vmem>>, vector<1x8x8xbf16>
    %69 = vector.shape_cast %68 : vector<1x8x8xbf16> to vector<8x8xbf16>
    %70 = vector.extract_strided_slice %62 {offsets = [0, 1], sizes = [8, 188], strides = [1, 1]} : vector<8x222xbf16> to vector<8x188xbf16>
    %cst_48 = arith.constant dense<0.000000e+00> : vector<8x188xf32>
    %71 = tpu.matmul %69, %70, %cst_48 {dimension_numbers = #tpu.dot_dimension_numbers<[1], [0], [0], [1], [0, 0, 1, 1], [], []>} : vector<8x8xbf16>, vector<8x188xbf16>, vector<8x188xf32> -> vector<8x188xf32>
    %72 = arith.addf %67, %71 : vector<8x188xf32>
    %c2_49 = arith.constant 2 : index
    %c0_50 = arith.constant 0 : index
    %c0_51 = arith.constant 0 : index
    %73 = vector.load %arg3[%c2_49, %c0_50, %c0_51] : memref<9x8x8xbf16, #tpu.memory_space<vmem>>, vector<1x8x8xbf16>
    %74 = vector.shape_cast %73 : vector<1x8x8xbf16> to vector<8x8xbf16>
    %75 = vector.extract_strided_slice %62 {offsets = [0, 2], sizes = [8, 188], strides = [1, 1]} : vector<8x222xbf16> to vector<8x188xbf16>
    %cst_52 = arith.constant dense<0.000000e+00> : vector<8x188xf32>
    %76 = tpu.matmul %74, %75, %cst_52 {dimension_numbers = #tpu.dot_dimension_numbers<[1], [0], [0], [1], [0, 0, 1, 1], [], []>} : vector<8x8xbf16>, vector<8x188xbf16>, vector<8x188xf32> -> vector<8x188xf32>
    %77 = arith.addf %72, %76 : vector<8x188xf32>
    %c3_53 = arith.constant 3 : index
    %c0_54 = arith.constant 0 : index
    %c0_55 = arith.constant 0 : index
    %78 = vector.load %arg3[%c3_53, %c0_54, %c0_55] : memref<9x8x8xbf16, #tpu.memory_space<vmem>>, vector<1x8x8xbf16>
    %79 = vector.shape_cast %78 : vector<1x8x8xbf16> to vector<8x8xbf16>
    %80 = vector.extract_strided_slice %62 {offsets = [0, 16], sizes = [8, 188], strides = [1, 1]} : vector<8x222xbf16> to vector<8x188xbf16>
    %cst_56 = arith.constant dense<0.000000e+00> : vector<8x188xf32>
    %81 = tpu.matmul %79, %80, %cst_56 {dimension_numbers = #tpu.dot_dimension_numbers<[1], [0], [0], [1], [0, 0, 1, 1], [], []>} : vector<8x8xbf16>, vector<8x188xbf16>, vector<8x188xf32> -> vector<8x188xf32>
    %82 = arith.addf %77, %81 : vector<8x188xf32>
    %c4_57 = arith.constant 4 : index
    %c0_58 = arith.constant 0 : index
    %c0_59 = arith.constant 0 : index
    %83 = vector.load %arg3[%c4_57, %c0_58, %c0_59] : memref<9x8x8xbf16, #tpu.memory_space<vmem>>, vector<1x8x8xbf16>
    %84 = vector.shape_cast %83 : vector<1x8x8xbf16> to vector<8x8xbf16>
    %85 = vector.extract_strided_slice %62 {offsets = [0, 17], sizes = [8, 188], strides = [1, 1]} : vector<8x222xbf16> to vector<8x188xbf16>
    %cst_60 = arith.constant dense<0.000000e+00> : vector<8x188xf32>
    %86 = tpu.matmul %84, %85, %cst_60 {dimension_numbers = #tpu.dot_dimension_numbers<[1], [0], [0], [1], [0, 0, 1, 1], [], []>} : vector<8x8xbf16>, vector<8x188xbf16>, vector<8x188xf32> -> vector<8x188xf32>
    %87 = arith.addf %82, %86 : vector<8x188xf32>
    %c5_61 = arith.constant 5 : index
    %c0_62 = arith.constant 0 : index
    %c0_63 = arith.constant 0 : index
    %88 = vector.load %arg3[%c5_61, %c0_62, %c0_63] : memref<9x8x8xbf16, #tpu.memory_space<vmem>>, vector<1x8x8xbf16>
    %89 = vector.shape_cast %88 : vector<1x8x8xbf16> to vector<8x8xbf16>
    %90 = vector.extract_strided_slice %62 {offsets = [0, 18], sizes = [8, 188], strides = [1, 1]} : vector<8x222xbf16> to vector<8x188xbf16>
    %cst_64 = arith.constant dense<0.000000e+00> : vector<8x188xf32>
    %91 = tpu.matmul %89, %90, %cst_64 {dimension_numbers = #tpu.dot_dimension_numbers<[1], [0], [0], [1], [0, 0, 1, 1], [], []>} : vector<8x8xbf16>, vector<8x188xbf16>, vector<8x188xf32> -> vector<8x188xf32>
    %92 = arith.addf %87, %91 : vector<8x188xf32>
    %c6_65 = arith.constant 6 : index
    %c0_66 = arith.constant 0 : index
    %c0_67 = arith.constant 0 : index
    %93 = vector.load %arg3[%c6_65, %c0_66, %c0_67] : memref<9x8x8xbf16, #tpu.memory_space<vmem>>, vector<1x8x8xbf16>
    %94 = vector.shape_cast %93 : vector<1x8x8xbf16> to vector<8x8xbf16>
    %95 = vector.extract_strided_slice %62 {offsets = [0, 32], sizes = [8, 188], strides = [1, 1]} : vector<8x222xbf16> to vector<8x188xbf16>
    %cst_68 = arith.constant dense<0.000000e+00> : vector<8x188xf32>
    %96 = tpu.matmul %94, %95, %cst_68 {dimension_numbers = #tpu.dot_dimension_numbers<[1], [0], [0], [1], [0, 0, 1, 1], [], []>} : vector<8x8xbf16>, vector<8x188xbf16>, vector<8x188xf32> -> vector<8x188xf32>
    %97 = arith.addf %92, %96 : vector<8x188xf32>
    %c7_69 = arith.constant 7 : index
    %c0_70 = arith.constant 0 : index
    %c0_71 = arith.constant 0 : index
    %98 = vector.load %arg3[%c7_69, %c0_70, %c0_71] : memref<9x8x8xbf16, #tpu.memory_space<vmem>>, vector<1x8x8xbf16>
    %99 = vector.shape_cast %98 : vector<1x8x8xbf16> to vector<8x8xbf16>
    %100 = vector.extract_strided_slice %62 {offsets = [0, 33], sizes = [8, 188], strides = [1, 1]} : vector<8x222xbf16> to vector<8x188xbf16>
    %cst_72 = arith.constant dense<0.000000e+00> : vector<8x188xf32>
    %101 = tpu.matmul %99, %100, %cst_72 {dimension_numbers = #tpu.dot_dimension_numbers<[1], [0], [0], [1], [0, 0, 1, 1], [], []>} : vector<8x8xbf16>, vector<8x188xbf16>, vector<8x188xf32> -> vector<8x188xf32>
    %102 = arith.addf %97, %101 : vector<8x188xf32>
    %c8_73 = arith.constant 8 : index
    %c0_74 = arith.constant 0 : index
    %c0_75 = arith.constant 0 : index
    %103 = vector.load %arg3[%c8_73, %c0_74, %c0_75] : memref<9x8x8xbf16, #tpu.memory_space<vmem>>, vector<1x8x8xbf16>
    %104 = vector.shape_cast %103 : vector<1x8x8xbf16> to vector<8x8xbf16>
    %105 = vector.extract_strided_slice %62 {offsets = [0, 34], sizes = [8, 188], strides = [1, 1]} : vector<8x222xbf16> to vector<8x188xbf16>
    %cst_76 = arith.constant dense<0.000000e+00> : vector<8x188xf32>
    %106 = tpu.matmul %104, %105, %cst_76 {dimension_numbers = #tpu.dot_dimension_numbers<[1], [0], [0], [1], [0, 0, 1, 1], [], []>} : vector<8x8xbf16>, vector<8x188xbf16>, vector<8x188xf32> -> vector<8x188xf32>
    %107 = arith.addf %102, %106 : vector<8x188xf32>
    %108 = vector.extract_strided_slice %14 {offsets = [0, 34], sizes = [4, 188], strides = [1, 1]} : vector<4x256xbf16> to vector<4x188xbf16>
    %cst_77 = arith.constant dense<0.000000e+00> : vector<8x188xf32>
    %109 = tpu.matmul %12, %108, %cst_77 {dimension_numbers = #tpu.dot_dimension_numbers<[1], [0], [0], [1], [0, 0, 1, 1], [], []>} : vector<8x4xbf16>, vector<4x188xbf16>, vector<8x188xf32> -> vector<8x188xf32>
    %110 = arith.addf %11, %109 : vector<8x188xf32>
    %111 = arith.addf %107, %110 : vector<8x188xf32>
    %cst_78 = arith.constant 0.000000e+00 : f32
    %112 = vector.broadcast %cst_78 : f32 to vector<8x188xf32>
    %113 = arith.maximumf %111, %112 : vector<8x188xf32>
    %c0_79 = arith.constant 0 : index
    %c0_80 = arith.constant 0 : index
    %c0_81 = arith.constant 0 : index
    %114 = vector.load %arg6[%c0_79, %c0_80, %c0_81] : memref<1x8x192xf32, #tpu.memory_space<vmem>>, vector<1x8x188xf32>
    %115 = vector.shape_cast %114 : vector<1x8x188xf32> to vector<8x188xf32>
    %116 = vector.shape_cast %113 : vector<8x188xf32> to vector<1x8x188xf32>
    tpu.vector_store %arg6[%c0_79, %c0_80, %c0_81], %116 {strides = array<i32>} : memref<1x8x192xf32, #tpu.memory_space<vmem>>, vector<1x8x188xf32>,
    return
  }
  func.func @transform_0(%arg0: i32) -> (i32, i32, i32) {
    %c0_i32 = arith.constant 0 : i32
    %c0_i32_0 = arith.constant 0 : i32
    %c0_i32_1 = arith.constant 0 : i32
    return %arg0, %c0_i32, %c0_i32_0 : i32, i32, i32
  }
  func.func @transform_1(%arg0: i32) -> (i32, i32, i32) {
    %c0_i32 = arith.constant 0 : i32
    %c0_i32_0 = arith.constant 0 : i32
    %c0_i32_1 = arith.constant 0 : i32
    %c0_i32_2 = arith.constant 0 : i32
    return %c0_i32, %c0_i32_0, %c0_i32_1 : i32, i32, i32
  }
  func.func @transform_2(%arg0: i32) -> (i32, i32, i32) {
    %c0_i32 = arith.constant 0 : i32
    %c0_i32_0 = arith.constant 0 : i32
    %c0_i32_1 = arith.constant 0 : i32
    %c0_i32_2 = arith.constant 0 : i32
    return %c0_i32, %c0_i32_0, %c0_i32_1 : i32, i32, i32
  }
  func.func @transform_3(%arg0: i32) -> (i32, i32) {
    %c0_i32 = arith.constant 0 : i32
    %c0_i32_0 = arith.constant 0 : i32
    %c0_i32_1 = arith.constant 0 : i32
    return %c0_i32, %c0_i32_0 : i32, i32
  }
  func.func @transform_4(%arg0: i32) -> (i32, i32, i32) {
    %c0_i32 = arith.constant 0 : i32
    %c0_i32_0 = arith.constant 0 : i32
    %c0_i32_1 = arith.constant 0 : i32
    %c0_i32_2 = arith.constant 0 : i32
    return %c0_i32, %c0_i32_0, %c0_i32_1 : i32, i32, i32
  }
  func.func @transform_5(%arg0: i32) -> (i32, i32, i32) {
    %c0_i32 = arith.constant 0 : i32
    %c0_i32_0 = arith.constant 0 : i32
    %c0_i32_1 = arith.constant 0 : i32
    return %arg0, %c0_i32, %c0_i32_0 : i32, i32, i32
  }
}

</mosaic_0001>

<llo_original>
// kernel: tpu_custom_call.1
$region0: #{tpu_custom_call.1}
  #allocation0 [shape = 'u32[]', space=smem, size = 0x4, offset = 0x4, fixed_abs, tag = 'smem constant byte address 0x4 - core index']
  #allocation1 [shape = 'u32[72,128]{1,0:T(1,128)}', space=vmem, size = 0x9000, scoped, tag = 'internal scratch']
  %s0 = inlined_call_operand.vmem [shape: bf16[2,4,256], index: 0, kind: input, shape index: {}]
  %s1 = inlined_call_operand.vmem [shape: bf16[9,8,4], index: 1, kind: input, shape index: {}]
  %s2 = inlined_call_operand.vmem [shape: bf16[9,8,8], index: 2, kind: input, shape index: {}]
  %s3 = inlined_call_operand.vmem [shape: bf16[8,4], index: 3, kind: input, shape index: {}]
  %s4 = inlined_call_operand.vmem [shape: f32[3,8,1], index: 4, kind: input, shape index: {}]
  %s5 = inlined_call_operand.hbm [shape: f32[2,8,192], index: 5, kind: output, shape index: {}]
  %s6 = sld [smem:[#allocation0]]
  $region53: #{tpu_custom_call.1} parent=0
    _
  %s8 = ssub.s32 1, %s6
  %s9 = scalar_select 0, %s8, %s6
  $region1: #{tpu_custom_call.1} parent=0
    #allocation2 [shape = 'u8[16384]{0}', space=vmem, size = 0x4000, scoped, tag = 'output window, operand 0']
    #allocation3 [shape = 's32[2]{0}', space=sflag, size = 0x8, scoped, tag = 'scoped memory for tpu_custom_call.1']
    %10 = vsyncpa [#allocation3], 0
    %s11 = scalar_lea.sflag [#allocation3], 1
    %12 = vsyncpa %s11, 0
    loop: start=0, step=1, limit=4
    $region2: #{tpu_custom_call.1} parent=1 // loop_pre_header
      _
    $region3: #{tpu_custom_call.1} parent=1 // loop_header
      %s14 = sphi 0, %s18
      %p15 = scmp.ge.s32.totalorder %s14, 4
      %s24 = sphi 0, %s26
      %s27 = sphi 0, %s24
      %s28 = sphi 0, %s27
      %s44 = sphi 0, %s28
      %s48 = sphi 0, %s48
      %s50 = sphi 0, %s48
      %s51 = sphi 0, %s50
      %s65 = sphi 0, %s51
      %s69 = sphi 0, %s69
      %s71 = sphi 0, %s69
      %s72 = sphi 0, %s71
      %s86 = sphi 0, %s72
      %s90 = sphi 0, %s90
      %s92 = sphi 0, %s90
      %s93 = sphi 0, %s92
      %s107 = sphi 0, %s93
      %s111 = sphi 0, %s111
      %s113 = sphi 0, %s111
      %s114 = sphi 0, %s113
      %s128 = sphi 0, %s114
      %s134 = sphi 0, %s136
      %s137 = sphi 0, %s134
      %s138 = sphi 0, %s137
      %s154 = sphi 0, %s138
    $region4: #{tpu_custom_call.1} parent=1 // loop_header_branch
      %17 = sbr.rel (%p15) target = $region8
    $region5: #{tpu_custom_call.1} parent=1 // loop_body
      %s19 = ssub.s32 %s14, 1
      %s20 = ssub.s32 %s14, 2
      %s21 = sadd.s32 %s14, 1
      %s22 = ssub.s32 %s14, %s21
      %p23 = scmp.eq.s32.totalorder %s22, 0
      %s25 = sadd.s32 %s24, 1
      %s26 = scalar_select %p23, %s24, %s25
      %p29 = pneg %p23
      %p30 = scmp.eq.s32.totalorder %s14, 1
      %p31 = por %p29, %p30
      %p32 = scmp.ne.s32.totalorder %s24, %s27
      %p33 = scmp.eq.s32.totalorder %s14, 0
      %p34 = por %p32, %p33
      %p35 = scmp.ne.s32.totalorder %s24, %s27
      %p36 = scmp.eq.s32.totalorder %s19, 1
      %p37 = por %p35, %p36
      %p38 = scmp.ne.s32.totalorder %s27, %s28
      %p39 = scmp.eq.s32.totalorder %s19, 0
      %p40 = por %p38, %p39
      %p41 = scmp.ne.s32.totalorder %s27, %s28
      %p42 = scmp.eq.s32.totalorder %s20, 1
      %p43 = por %p41, %p42
      %p45 = scmp.ne.s32.totalorder %s28, %s44
      %p46 = scmp.eq.s32.totalorder %s20, 0
      %p47 = por %p45, %p46
      %s49 = sadd.s32 %s48, 1
      %p52 = scmp.eq.s32.totalorder %s14, 1
      %p53 = scmp.ne.s32.totalorder %s48, %s50
      %p54 = scmp.eq.s32.totalorder %s14, 0
      %p55 = por %p53, %p54
      %p56 = scmp.ne.s32.totalorder %s48, %s50
      %p57 = scmp.eq.s32.totalorder %s19, 1
      %p58 = por %p56, %p57
      %p59 = scmp.ne.s32.totalorder %s50, %s51
      %p60 = scmp.eq.s32.totalorder %s19, 0
      %p61 = por %p59, %p60
      %p62 = scmp.ne.s32.totalorder %s50, %s51
      %p63 = scmp.eq.s32.totalorder %s20, 1
      %p64 = por %p62, %p63
      %p66 = scmp.ne.s32.totalorder %s51, %s65
      %p67 = scmp.eq.s32.totalorder %s20, 0
      %p68 = por %p66, %p67
      %s70 = sadd.s32 %s69, 1
      %p73 = scmp.eq.s32.totalorder %s14, 1
      %p74 = scmp.ne.s32.totalorder %s69, %s71
      %p75 = scmp.eq.s32.totalorder %s14, 0
      %p76 = por %p74, %p75
      %p77 = scmp.ne.s32.totalorder %s69, %s71
      %p78 = scmp.eq.s32.totalorder %s19, 1
      %p79 = por %p77, %p78
      %p80 = scmp.ne.s32.totalorder %s71, %s72
      %p81 = scmp.eq.s32.totalorder %s19, 0
      %p82 = por %p80, %p81
      %p83 = scmp.ne.s32.totalorder %s71, %s72
      %p84 = scmp.eq.s32.totalorder %s20, 1
      %p85 = por %p83, %p84
      %p87 = scmp.ne.s32.totalorder %s72, %s86
      %p88 = scmp.eq.s32.totalorder %s20, 0
      %p89 = por %p87, %p88
      %s91 = sadd.s32 %s90, 1
      %p94 = scmp.eq.s32.totalorder %s14, 1
      %p95 = scmp.ne.s32.totalorder %s90, %s92
      %p96 = scmp.eq.s32.totalorder %s14, 0
      %p97 = por %p95, %p96
      %p98 = scmp.ne.s32.totalorder %s90, %s92
      %p99 = scmp.eq.s32.totalorder %s19, 1
      %p100 = por %p98, %p99
      %p101 = scmp.ne.s32.totalorder %s92, %s93
      %p102 = scmp.eq.s32.totalorder %s19, 0
      %p103 = por %p101, %p102
      %p104 = scmp.ne.s32.totalorder %s92, %s93
      %p105 = scmp.eq.s32.totalorder %s20, 1
      %p106 = por %p104, %p105
      %p108 = scmp.ne.s32.totalorder %s93, %s107
      %p109 = scmp.eq.s32.totalorder %s20, 0
      %p110 = por %p108, %p109
      %s112 = sadd.s32 %s111, 1
      %p115 = scmp.eq.s32.totalorder %s14, 1
      %p116 = scmp.ne.s32.totalorder %s111, %s113
      %p117 = scmp.eq.s32.totalorder %s14, 0
      %p118 = por %p116, %p117
      %p119 = scmp.ne.s32.totalorder %s111, %s113
      %p120 = scmp.eq.s32.totalorder %s19, 1
      %p121 = por %p119, %p120
      %p122 = scmp.ne.s32.totalorder %s113, %s114
      %p123 = scmp.eq.s32.totalorder %s19, 0
      %p124 = por %p122, %p123
      %p125 = scmp.ne.s32.totalorder %s113, %s114
      %p126 = scmp.eq.s32.totalorder %s20, 1
      %p127 = por %p125, %p126
      %p129 = scmp.ne.s32.totalorder %s114, %s128
      %p130 = scmp.eq.s32.totalorder %s20, 0
      %p131 = por %p129, %p130
      %s132 = ssub.s32 %s14, %s21
      %p133 = scmp.eq.s32.totalorder %s132, 0
      %s135 = sadd.s32 %s134, 1
      %s136 = scalar_select %p133, %s134, %s135
      %p139 = pneg %p133
      %p140 = scmp.eq.s32.totalorder %s14, 1
      %p141 = por %p139, %p140
      %p142 = scmp.ne.s32.totalorder %s134, %s137
      %p143 = scmp.eq.s32.totalorder %s14, 0
      %p144 = por %p142, %p143
      %p145 = scmp.ne.s32.totalorder %s134, %s137
      %p146 = scmp.eq.s32.totalorder %s19, 1
      %p147 = por %p145, %p146
      %p148 = scmp.ne.s32.totalorder %s137, %s138
      %p149 = scmp.eq.s32.totalorder %s19, 0
      %p150 = por %p148, %p149
      %p151 = scmp.ne.s32.totalorder %s137, %s138
      %p152 = scmp.eq.s32.totalorder %s20, 1
      %p153 = por %p151, %p152
      %p155 = scmp.ne.s32.totalorder %s138, %s154
      %p156 = scmp.eq.s32.totalorder %s20, 0
      %p157 = por %p155, %p156
      %p158 = scmp.le.s32.totalorder 1, %s14
      %p159 = scmp.lt.s32.totalorder %s14, 3
      %p160 = pnand %p158, %p159
      %p161 = pneg %p160
      // Predicated region
      $region9: #{tpu_custom_call.1} parent=5 // pred_check
        _
      $region10: #{tpu_custom_call.1} parent=5 // pred_check_branch
        %163 = sbr.rel (%p160) target = $region12
      $region11: #{tpu_custom_call.1} parent=5 // pred_region
        %s164 = ssub.s32 %s14, 1
        // Predicated region
        $region13: #{tpu_custom_call.1} parent=11 // pred_check
          %p165 = pneg %p61
        $region14: #{tpu_custom_call.1} parent=11 // pred_check_branch
          %167 = sbr.rel (%p165) target = $region16
        $region15: #{tpu_custom_call.1} parent=11 // pred_region
          _
        $region16: #{tpu_custom_call.1} parent=11 // pred_fallthru
          _
        // Predicated region
        $region17: #{tpu_custom_call.1} parent=11 // pred_check
          %p168 = pneg %p82
        $region18: #{tpu_custom_call.1} parent=11 // pred_check_branch
          %170 = sbr.rel (%p168) target = $region20
        $region19: #{tpu_custom_call.1} parent=11 // pred_region
          _
        $region20: #{tpu_custom_call.1} parent=11 // pred_fallthru
          _
        // Predicated region
        $region21: #{tpu_custom_call.1} parent=11 // pred_check
          %p171 = pneg %p103
        $region22: #{tpu_custom_call.1} parent=11 // pred_check_branch
          %173 = sbr.rel (%p171) target = $region24
        $region23: #{tpu_custom_call.1} parent=11 // pred_region
          _
        $region24: #{tpu_custom_call.1} parent=11 // pred_fallthru
          _
        // Predicated region
        $region25: #{tpu_custom_call.1} parent=11 // pred_check
          %p174 = pneg %p124
        $region26: #{tpu_custom_call.1} parent=11 // pred_check_branch
          %176 = sbr.rel (%p174) target = $region28
        $region27: #{tpu_custom_call.1} parent=11 // pred_region
          _
        $region28: #{tpu_custom_call.1} parent=11 // pred_fallthru
          _
      $region12: #{tpu_custom_call.1} parent=5 // pred_fallthru
        _
      %p177 = scmp.lt.s32.totalorder %s14, 2
      // Predicated region
      $region29: #{tpu_custom_call.1} parent=5 // pred_check
        %p178 = pneg %p177
      $region30: #{tpu_custom_call.1} parent=5 // pred_check_branch
        %180 = sbr.rel (%p178) target = $region32
      $region31: #{tpu_custom_call.1} parent=5 // pred_region
        // Predicated region
        $region33: #{tpu_custom_call.1} parent=31 // pred_check
          %p181 = pneg %p34
        $region34: #{tpu_custom_call.1} parent=31 // pred_check_branch
          %183 = sbr.rel (%p181) target = $region36
        $region35: #{tpu_custom_call.1} parent=31 // pred_region
          %p184 = scmp.lt.s32.totalorder %s14, 1
          %s185 = scalar_select %p184, %s14, 1
          %s186 = smul.addr %s185, 2
          %s187 = smul.addr %s186, 2
          %s188 = scalar_lea.vmem %s0, %s187
        $region36: #{tpu_custom_call.1} parent=31 // pred_fallthru
          _
      $region32: #{tpu_custom_call.1} parent=5 // pred_fallthru
        _
      %p189 = scmp.le.s32.totalorder 1, %s14
      %p190 = scmp.lt.s32.totalorder %s14, 3
      %p191 = pnand %p189, %p190
      %p192 = pneg %p191
      // Predicated region
      $region37: #{tpu_custom_call.1} parent=5 // pred_check
        _
      $region38: #{tpu_custom_call.1} parent=5 // pred_check_branch
        %194 = sbr.rel (%p191) target = $region40
      $region39: #{tpu_custom_call.1} parent=5 // pred_region
        %s195 = ssub.s32 %s14, 1
        %p196 = scmp.lt.s32.totalorder %s19, 1
        %s197 = scalar_select %p196, %s19, 1
        %s198 = smul.addr %s197, 2
        %s199 = smul.addr %s198, 2
        %s200 = scalar_lea.vmem %s0, %s199
        %p201 = pneg %p40
        %p202 = pneg %p37
        %p203 = pneg %p61
        %p204 = pneg %p58
        %p205 = pneg %p82
        %p206 = pneg %p79
        %p207 = pneg %p103
        %p208 = pneg %p100
        %p209 = pneg %p124
        %p210 = pneg %p121
        %p211 = pneg %p150
        %p212 = pneg %p147
        %s213 = sand.u32 %s137, 1
        %s214 = scalar_lea.sflag [#allocation3], %s213
        %s215 = sand.u32 %s137, 1
        %s216 = smul.addr %s215, 16
        %s217 = scalar_lea.vmem [#allocation2], %s216
        %p218 = scmp.lt.s32.totalorder %s19, 1
        %s219 = scalar_select %p218, %s19, 1
        %s220 = smul.addr %s219, 2
        %s221 = smul.addr %s220, 2
        %s222 = scalar_lea.vmem %s0, %s221
        %v224 = vld [vmem:[%s4] sm:$0xff]
        %226 = vset.pattern.permute.xlu0 0
        %227 = vperm.xlu0 %226, %v224
        %v228 = vpop.permute.xlu0 %227
        %s230 = scalar_lea.vmem %s4, 8
        %v231 = vld [vmem:[%s230] sm:$0xff]
        %233 = vset.pattern.permute.xlu0 0
        %234 = vperm.xlu0 %233, %v231
        %v235 = vpop.permute.xlu0 %234
        %s237 = scalar_lea.vmem %s4, 16
        %v238 = vld [vmem:[%s237] sm:$0xff]
        %240 = vset.pattern.permute.xlu0 0
        %241 = vperm.xlu0 %240, %v238
        %v242 = vpop.permute.xlu0 %241
        %v244 = vld [vmem:[%s3] sm:$0xf]
        %v245 = vld [vmem:[%s222] sm:$0xf]
        %v246 = vld [vmem:[%s1] sm:$0xf]
        %248 = vst [vmem:[#allocation1] ss:$4 sm:$0xff] %v245
        %v249 = vld.sshfl [vmem:[#allocation1] sm:$0xff pattern:$0x73625140]
        %v250 = vld.sshfl [vmem:[#allocation1 + $0x8] sm:$0xff pattern:$0x73625140]
        %vm251 = vcmask 31744
        %v253 = vsel %vm251, %v246, 0
        %vm255 = vcmask 1041408
        %v256 = vsel %vm255, %v249, 0
        %v258 = vsel %vm255, %v250, 0
        %260 = vmatpush.bf16.msra.mxu0 0
        %261 = vmatpush.bf16.msra.mxu0 0
        %262 = vmatpush.bf16.msra.mxu0 0
        %263 = vmatpush.bf16.msra.mxu0 0
        %264 = vmatpush.bf16.msra.mxu0 0
        %265 = vmatpush.bf16.msra.mxu0 0
        %266 = vmatpush.bf16.msra.mxu0 0
        %267 = vmatpush.bf16.msra.mxu0 %v256
        %268 = vmatmul.bf16.gmra.mxu0 %v253
        %v269 = vpop.f32.mrf.mxu0
        %v270 = vadd.f32 0.0, %v269
        %v271 = vpop.f32.mrf.mxu0
        %272 = vdwg.mxu0
        %273 = vmatpush.bf16.msra.mxu0 0
        %274 = vmatpush.bf16.msra.mxu0 0
        %275 = vmatpush.bf16.msra.mxu0 0
        %276 = vmatpush.bf16.msra.mxu0 0
        %277 = vmatpush.bf16.msra.mxu0 0
        %278 = vmatpush.bf16.msra.mxu0 0
        %279 = vmatpush.bf16.msra.mxu0 0
        %280 = vmatpush.bf16.msra.mxu0 %v258
        %281 = vmatmul.bf16.gmra.mxu0 %v253
        %v282 = vpop.f32.mrf.mxu0
        %v283 = vadd.f32 0.0, %v282
        %v284 = vpop.f32.mrf.mxu0
        %285 = vdwg.mxu0
        %v286 = vadd.f32 %v228, %v270
        %v287 = vadd.f32 %v228, %v283
        %s288 = scalar_lea.vmem %s1, 4
        %v289 = vld [vmem:[%s288] sm:$0xf]
        %290 = vst [vmem:[#allocation1] ss:$4 sm:$0xff] %v245
        %v291 = vld.sshfl [vmem:[#allocation1] sm:$0xff pattern:$0x73625140]
        %v293 = vld.sshfl [vmem:[#allocation1 + $0x8] sm:$0xff pattern:$0x73625140]
        %295 = vrot.lane.b32.xlu0 %v291, 127
        %v296 = vpop.permute.xlu0 %295
        %297 = vrot.lane.b32.xlu0 %v293, 127
        %v298 = vpop.permute.xlu0 %297
        %vm299 = vcmask 1039360
        %v300 = vsel %vm299, %v296, %v298
        %v302 = vsel %vm251, %v289, 0
        %v305 = vsel %vm255, %v300, 0
        %v308 = vsel %vm255, %v298, 0
        %310 = vmatpush.bf16.msra.mxu0 0
        %311 = vmatpush.bf16.msra.mxu0 0
        %312 = vmatpush.bf16.msra.mxu0 0
        %313 = vmatpush.bf16.msra.mxu0 0
        %314 = vmatpush.bf16.msra.mxu0 0
        %315 = vmatpush.bf16.msra.mxu0 0
        %316 = vmatpush.bf16.msra.mxu0 0
        %317 = vmatpush.bf16.msra.mxu0 %v305
        %318 = vmatmul.bf16.gmra.mxu0 %v302
        %v319 = vpop.f32.mrf.mxu0
        %v320 = vadd.f32 0.0, %v319
        %v321 = vpop.f32.mrf.mxu0
        %322 = vdwg.mxu0
        %323 = vmatpush.bf16.msra.mxu0 0
        %324 = vmatpush.bf16.msra.mxu0 0
        %325 = vmatpush.bf16.msra.mxu0 0
        %326 = vmatpush.bf16.msra.mxu0 0
        %327 = vmatpush.bf16.msra.mxu0 0
        %328 = vmatpush.bf16.msra.mxu0 0
        %329 = vmatpush.bf16.msra.mxu0 0
        %330 = vmatpush.bf16.msra.mxu0 %v308
        %331 = vmatmul.bf16.gmra.mxu0 %v302
        %v332 = vpop.f32.mrf.mxu0
        %v333 = vadd.f32 0.0, %v332
        %v334 = vpop.f32.mrf.mxu0
        %335 = vdwg.mxu0
        %v336 = vadd.f32 %v286, %v320
        %v337 = vadd.f32 %v287, %v333
        %s338 = scalar_lea.vmem %s1, 8
        %v339 = vld [vmem:[%s338] sm:$0xf]
        %340 = vst [vmem:[#allocation1] ss:$4 sm:$0xff] %v245
        %v341 = vld.sshfl [vmem:[#allocation1] sm:$0xff pattern:$0x73625140]
        %v343 = vld.sshfl [vmem:[#allocation1 + $0x8] sm:$0xff pattern:$0x73625140]
        %345 = vrot.lane.b32.xlu0 %v341, 126
        %v346 = vpop.permute.xlu0 %345
        %347 = vrot.lane.b32.xlu0 %v343, 126
        %v348 = vpop.permute.xlu0 %347
        %vm349 = vcmask 1031168
        %v350 = vsel %vm349, %v346, %v348
        %v352 = vsel %vm251, %v339, 0
        %v355 = vsel %vm255, %v350, 0
        %v358 = vsel %vm255, %v348, 0
        %360 = vmatpush.bf16.msra.mxu0 0
        %361 = vmatpush.bf16.msra.mxu0 0
        %362 = vmatpush.bf16.msra.mxu0 0
        %363 = vmatpush.bf16.msra.mxu0 0
        %364 = vmatpush.bf16.msra.mxu0 0
        %365 = vmatpush.bf16.msra.mxu0 0
        %366 = vmatpush.bf16.msra.mxu0 0
        %367 = vmatpush.bf16.msra.mxu0 %v355
        %368 = vmatmul.bf16.gmra.mxu0 %v352
        %v369 = vpop.f32.mrf.mxu0
        %v370 = vadd.f32 0.0, %v369
        %v371 = vpop.f32.mrf.mxu0
        %372 = vdwg.mxu0
        %373 = vmatpush.bf16.msra.mxu0 0
        %374 = vmatpush.bf16.msra.mxu0 0
        %375 = vmatpush.bf16.msra.mxu0 0
        %376 = vmatpush.bf16.msra.mxu0 0
        %377 = vmatpush.bf16.msra.mxu0 0
        %378 = vmatpush.bf16.msra.mxu0 0
        %379 = vmatpush.bf16.msra.mxu0 0
        %380 = vmatpush.bf16.msra.mxu0 %v358
        %381 = vmatmul.bf16.gmra.mxu0 %v352
        %v382 = vpop.f32.mrf.mxu0
        %v383 = vadd.f32 0.0, %v382
        %v384 = vpop.f32.mrf.mxu0
        %385 = vdwg.mxu0
        %v386 = vadd.f32 %v336, %v370
        %v387 = vadd.f32 %v337, %v383
        %s388 = scalar_lea.vmem %s1, 12
        %v389 = vld [vmem:[%s388] sm:$0xf]
        %390 = vst [vmem:[#allocation1] ss:$4 sm:$0xff] %v245
        %v391 = vld.sshfl [vmem:[#allocation1] sm:$0xff pattern:$0x73625140]
        %v393 = vld.sshfl [vmem:[#allocation1 + $0x8] sm:$0xff pattern:$0x73625140]
        %395 = vrot.lane.b32.xlu0 %v391, 112
        %v396 = vpop.permute.xlu0 %395
        %397 = vrot.lane.b32.xlu0 %v393, 112
        %v398 = vpop.permute.xlu0 %397
        %vm399 = vcmask 916480
        %v400 = vsel %vm399, %v396, %v398
        %v402 = vsel %vm251, %v389, 0
        %v405 = vsel %vm255, %v400, 0
        %v408 = vsel %vm255, %v398, 0
        %410 = vmatpush.bf16.msra.mxu0 0
        %411 = vmatpush.bf16.msra.mxu0 0
        %412 = vmatpush.bf16.msra.mxu0 0
        %413 = vmatpush.bf16.msra.mxu0 0
        %414 = vmatpush.bf16.msra.mxu0 0
        %415 = vmatpush.bf16.msra.mxu0 0
        %416 = vmatpush.bf16.msra.mxu0 0
        %417 = vmatpush.bf16.msra.mxu0 %v405
        %418 = vmatmul.bf16.gmra.mxu0 %v402
        %v419 = vpop.f32.mrf.mxu0
        %v420 = vadd.f32 0.0, %v419
        %v421 = vpop.f32.mrf.mxu0
        %422 = vdwg.mxu0
        %423 = vmatpush.bf16.msra.mxu0 0
        %424 = vmatpush.bf16.msra.mxu0 0
        %425 = vmatpush.bf16.msra.mxu0 0
        %426 = vmatpush.bf16.msra.mxu0 0
        %427 = vmatpush.bf16.msra.mxu0 0
        %428 = vmatpush.bf16.msra.mxu0 0
        %429 = vmatpush.bf16.msra.mxu0 0
        %430 = vmatpush.bf16.msra.mxu0 %v408
        %431 = vmatmul.bf16.gmra.mxu0 %v402
        %v432 = vpop.f32.mrf.mxu0
        %v433 = vadd.f32 0.0, %v432
        %v434 = vpop.f32.mrf.mxu0
        %435 = vdwg.mxu0
        %v436 = vadd.f32 %v386, %v420
        %v437 = vadd.f32 %v387, %v433
        %s438 = scalar_lea.vmem %s1, 16
        %v439 = vld [vmem:[%s438] sm:$0xf]
        %440 = vst [vmem:[#allocation1] ss:$4 sm:$0xff] %v245
        %v441 = vld.sshfl [vmem:[#allocation1] sm:$0xff pattern:$0x73625140]
        %v443 = vld.sshfl [vmem:[#allocation1 + $0x8] sm:$0xff pattern:$0x73625140]
        %445 = vrot.lane.b32.xlu0 %v441, 111
        %v446 = vpop.permute.xlu0 %445
        %447 = vrot.lane.b32.xlu0 %v443, 111
        %v448 = vpop.permute.xlu0 %447
        %vm449 = vcmask 908288
        %v450 = vsel %vm449, %v446, %v448
        %v452 = vsel %vm251, %v439, 0
        %v455 = vsel %vm255, %v450, 0
        %v458 = vsel %vm255, %v448, 0
        %460 = vmatpush.bf16.msra.mxu0 0
        %461 = vmatpush.bf16.msra.mxu0 0
        %462 = vmatpush.bf16.msra.mxu0 0
        %463 = vmatpush.bf16.msra.mxu0 0
        %464 = vmatpush.bf16.msra.mxu0 0
        %465 = vmatpush.bf16.msra.mxu0 0
        %466 = vmatpush.bf16.msra.mxu0 0
        %467 = vmatpush.bf16.msra.mxu0 %v455
        %468 = vmatmul.bf16.gmra.mxu0 %v452
        %v469 = vpop.f32.mrf.mxu0
        %v470 = vadd.f32 0.0, %v469
        %v471 = vpop.f32.mrf.mxu0
        %472 = vdwg.mxu0
        %473 = vmatpush.bf16.msra.mxu0 0
        %474 = vmatpush.bf16.msra.mxu0 0
        %475 = vmatpush.bf16.msra.mxu0 0
        %476 = vmatpush.bf16.msra.mxu0 0
        %477 = vmatpush.bf16.msra.mxu0 0
        %478 = vmatpush.bf16.msra.mxu0 0
        %479 = vmatpush.bf16.msra.mxu0 0
        %480 = vmatpush.bf16.msra.mxu0 %v458
        %481 = vmatmul.bf16.gmra.mxu0 %v452
        %v482 = vpop.f32.mrf.mxu0
        %v483 = vadd.f32 0.0, %v482
        %v484 = vpop.f32.mrf.mxu0
        %485 = vdwg.mxu0
        %v486 = vadd.f32 %v436, %v470
        %v487 = vadd.f32 %v437, %v483
        %s488 = scalar_lea.vmem %s1, 20
        %v489 = vld [vmem:[%s488] sm:$0xf]
        %490 = vst [vmem:[#allocation1] ss:$4 sm:$0xff] %v245
        %v491 = vld.sshfl [vmem:[#allocation1] sm:$0xff pattern:$0x73625140]
        %v493 = vld.sshfl [vmem:[#allocation1 + $0x8] sm:$0xff pattern:$0x73625140]
        %495 = vrot.lane.b32.xlu0 %v491, 110
        %v496 = vpop.permute.xlu0 %495
        %497 = vrot.lane.b32.xlu0 %v493, 110
        %v498 = vpop.permute.xlu0 %497
        %vm499 = vcmask 900096
        %v500 = vsel %vm499, %v496, %v498
        %v502 = vsel %vm251, %v489, 0
        %v505 = vsel %vm255, %v500, 0
        %v508 = vsel %vm255, %v498, 0
        %510 = vmatpush.bf16.msra.mxu0 0
        %511 = vmatpush.bf16.msra.mxu0 0
        %512 = vmatpush.bf16.msra.mxu0 0
        %513 = vmatpush.bf16.msra.mxu0 0
        %514 = vmatpush.bf16.msra.mxu0 0
        %515 = vmatpush.bf16.msra.mxu0 0
        %516 = vmatpush.bf16.msra.mxu0 0
        %517 = vmatpush.bf16.msra.mxu0 %v505
        %518 = vmatmul.bf16.gmra.mxu0 %v502
        %v519 = vpop.f32.mrf.mxu0
        %v520 = vadd.f32 0.0, %v519
        %v521 = vpop.f32.mrf.mxu0
        %522 = vdwg.mxu0
        %523 = vmatpush.bf16.msra.mxu0 0
        %524 = vmatpush.bf16.msra.mxu0 0
        %525 = vmatpush.bf16.msra.mxu0 0
        %526 = vmatpush.bf16.msra.mxu0 0
        %527 = vmatpush.bf16.msra.mxu0 0
        %528 = vmatpush.bf16.msra.mxu0 0
        %529 = vmatpush.bf16.msra.mxu0 0
        %530 = vmatpush.bf16.msra.mxu0 %v508
        %531 = vmatmul.bf16.gmra.mxu0 %v502
        %v532 = vpop.f32.mrf.mxu0
        %v533 = vadd.f32 0.0, %v532
        %v534 = vpop.f32.mrf.mxu0
        %535 = vdwg.mxu0
        %v536 = vadd.f32 %v486, %v520
        %v537 = vadd.f32 %v487, %v533
        %s538 = scalar_lea.vmem %s1, 24
        %v539 = vld [vmem:[%s538] sm:$0xf]
        %540 = vst [vmem:[#allocation1] ss:$4 sm:$0xff] %v245
        %v541 = vld.sshfl [vmem:[#allocation1] sm:$0xff pattern:$0x73625140]
        %v543 = vld.sshfl [vmem:[#allocation1 + $0x8] sm:$0xff pattern:$0x73625140]
        %545 = vrot.lane.b32.xlu0 %v541, 96
        %v546 = vpop.permute.xlu0 %545
        %547 = vrot.lane.b32.xlu0 %v543, 96
        %v548 = vpop.permute.xlu0 %547
        %vm549 = vcmask 785408
        %v550 = vsel %vm549, %v546, %v548
        %v552 = vsel %vm251, %v539, 0
        %v555 = vsel %vm255, %v550, 0
        %v558 = vsel %vm255, %v548, 0
        %560 = vmatpush.bf16.msra.mxu0 0
        %561 = vmatpush.bf16.msra.mxu0 0
        %562 = vmatpush.bf16.msra.mxu0 0
        %563 = vmatpush.bf16.msra.mxu0 0
        %564 = vmatpush.bf16.msra.mxu0 0
        %565 = vmatpush.bf16.msra.mxu0 0
        %566 = vmatpush.bf16.msra.mxu0 0
        %567 = vmatpush.bf16.msra.mxu0 %v555
        %568 = vmatmul.bf16.gmra.mxu0 %v552
        %v569 = vpop.f32.mrf.mxu0
        %v570 = vadd.f32 0.0, %v569
        %v571 = vpop.f32.mrf.mxu0
        %572 = vdwg.mxu0
        %573 = vmatpush.bf16.msra.mxu0 0
        %574 = vmatpush.bf16.msra.mxu0 0
        %575 = vmatpush.bf16.msra.mxu0 0
        %576 = vmatpush.bf16.msra.mxu0 0
        %577 = vmatpush.bf16.msra.mxu0 0
        %578 = vmatpush.bf16.msra.mxu0 0
        %579 = vmatpush.bf16.msra.mxu0 0
        %580 = vmatpush.bf16.msra.mxu0 %v558
        %581 = vmatmul.bf16.gmra.mxu0 %v552
        %v582 = vpop.f32.mrf.mxu0
        %v583 = vadd.f32 0.0, %v582
        %v584 = vpop.f32.mrf.mxu0
        %585 = vdwg.mxu0
        %v586 = vadd.f32 %v536, %v570
        %v587 = vadd.f32 %v537, %v583
        %s588 = scalar_lea.vmem %s1, 28
        %v589 = vld [vmem:[%s588] sm:$0xf]
        %590 = vst [vmem:[#allocation1] ss:$4 sm:$0xff] %v245
        %v591 = vld.sshfl [vmem:[#allocation1] sm:$0xff pattern:$0x73625140]
        %v593 = vld.sshfl [vmem:[#allocation1 + $0x8] sm:$0xff pattern:$0x73625140]
        %595 = vrot.lane.b32.xlu0 %v591, 95
        %v596 = vpop.permute.xlu0 %595
        %597 = vrot.lane.b32.xlu0 %v593, 95
        %v598 = vpop.permute.xlu0 %597
        %vm599 = vcmask 777216
        %v600 = vsel %vm599, %v596, %v598
        %v602 = vsel %vm251, %v589, 0
        %v605 = vsel %vm255, %v600, 0
        %v608 = vsel %vm255, %v598, 0
        %610 = vmatpush.bf16.msra.mxu0 0
        %611 = vmatpush.bf16.msra.mxu0 0
        %612 = vmatpush.bf16.msra.mxu0 0
        %613 = vmatpush.bf16.msra.mxu0 0
        %614 = vmatpush.bf16.msra.mxu0 0
        %615 = vmatpush.bf16.msra.mxu0 0
        %616 = vmatpush.bf16.msra.mxu0 0
        %617 = vmatpush.bf16.msra.mxu0 %v605
        %618 = vmatmul.bf16.gmra.mxu0 %v602
        %v619 = vpop.f32.mrf.mxu0
        %v620 = vadd.f32 0.0, %v619
        %v621 = vpop.f32.mrf.mxu0
        %622 = vdwg.mxu0
        %623 = vmatpush.bf16.msra.mxu0 0
        %624 = vmatpush.bf16.msra.mxu0 0
        %625 = vmatpush.bf16.msra.mxu0 0
        %626 = vmatpush.bf16.msra.mxu0 0
        %627 = vmatpush.bf16.msra.mxu0 0
        %628 = vmatpush.bf16.msra.mxu0 0
        %629 = vmatpush.bf16.msra.mxu0 0
        %630 = vmatpush.bf16.msra.mxu0 %v608
        %631 = vmatmul.bf16.gmra.mxu0 %v602
        %v632 = vpop.f32.mrf.mxu0
        %v633 = vadd.f32 0.0, %v632
        %v634 = vpop.f32.mrf.mxu0
        %635 = vdwg.mxu0
        %v636 = vadd.f32 %v586, %v620
        %v637 = vadd.f32 %v587, %v633
        %s638 = scalar_lea.vmem %s1, 32
        %v639 = vld [vmem:[%s638] sm:$0xf]
        %640 = vst [vmem:[#allocation1] ss:$4 sm:$0xff] %v245
        %v641 = vld.sshfl [vmem:[#allocation1] sm:$0xff pattern:$0x73625140]
        %v643 = vld.sshfl [vmem:[#allocation1 + $0x8] sm:$0xff pattern:$0x73625140]
        %645 = vrot.lane.b32.xlu0 %v641, 94
        %v646 = vpop.permute.xlu0 %645
        %647 = vrot.lane.b32.xlu0 %v643, 94
        %v648 = vpop.permute.xlu0 %647
        %vm649 = vcmask 769024
        %v650 = vsel %vm649, %v646, %v648
        %v652 = vsel %vm251, %v639, 0
        %v655 = vsel %vm255, %v650, 0
        %v658 = vsel %vm255, %v648, 0
        %660 = vmatpush.bf16.msra.mxu0 0
        %661 = vmatpush.bf16.msra.mxu0 0
        %662 = vmatpush.bf16.msra.mxu0 0
        %663 = vmatpush.bf16.msra.mxu0 0
        %664 = vmatpush.bf16.msra.mxu0 0
        %665 = vmatpush.bf16.msra.mxu0 0
        %666 = vmatpush.bf16.msra.mxu0 0
        %667 = vmatpush.bf16.msra.mxu0 %v655
        %668 = vmatmul.bf16.gmra.mxu0 %v652
        %v669 = vpop.f32.mrf.mxu0
        %v670 = vadd.f32 0.0, %v669
        %v671 = vpop.f32.mrf.mxu0
        %672 = vdwg.mxu0
        %673 = vmatpush.bf16.msra.mxu0 0
        %674 = vmatpush.bf16.msra.mxu0 0
        %675 = vmatpush.bf16.msra.mxu0 0
        %676 = vmatpush.bf16.msra.mxu0 0
        %677 = vmatpush.bf16.msra.mxu0 0
        %678 = vmatpush.bf16.msra.mxu0 0
        %679 = vmatpush.bf16.msra.mxu0 0
        %680 = vmatpush.bf16.msra.mxu0 %v658
        %681 = vmatmul.bf16.gmra.mxu0 %v652
        %v682 = vpop.f32.mrf.mxu0
        %v683 = vadd.f32 0.0, %v682
        %v684 = vpop.f32.mrf.mxu0
        %685 = vdwg.mxu0
        %v686 = vadd.f32 %v636, %v670
        %v687 = vadd.f32 %v637, %v683
        %v688 = vmax.f32 %v686, 0.0
        %v689 = vmax.f32 %v687, 0.0
        %v690 = vpack.c.bf16 %v689, %v688
        %v691 = vld [vmem:[%s2] sm:$0xf]
        %v693 = vunpack.c.l.b16 %v690
        %v694 = vunpack.c.h.b16 %v690
        %v695 = vpack.c.b16 %v693, %v693
        %v696 = vpack.c.b16 %v694, %v694
        %vm697 = vcmask 64512
        %v699 = vsel %vm697, %v691, 0
        %vm701 = vcmask 1043456
        %v703 = vsel %vm701, %v695, 0
        %v706 = vsel %vm701, %v696, 0
        %708 = vmatpush.bf16.msra.mxu0 0
        %709 = vmatpush.bf16.msra.mxu0 0
        %710 = vmatpush.bf16.msra.mxu0 0
        %711 = vmatpush.bf16.msra.mxu0 0
        %712 = vmatpush.bf16.msra.mxu0 0
        %713 = vmatpush.bf16.msra.mxu0 0
        %714 = vmatpush.bf16.msra.mxu0 0
        %715 = vmatpush.bf16.msra.mxu0 %v703
        %716 = vmatmul.bf16.gmra.mxu0 %v699
        %v717 = vpop.f32.mrf.mxu0
        %v718 = vadd.f32 0.0, %v717
        %v719 = vpop.f32.mrf.mxu0
        %720 = vdwg.mxu0
        %721 = vmatpush.bf16.msra.mxu0 0
        %722 = vmatpush.bf16.msra.mxu0 0
        %723 = vmatpush.bf16.msra.mxu0 0
        %724 = vmatpush.bf16.msra.mxu0 0
        %725 = vmatpush.bf16.msra.mxu0 0
        %726 = vmatpush.bf16.msra.mxu0 0
        %727 = vmatpush.bf16.msra.mxu0 0
        %728 = vmatpush.bf16.msra.mxu0 %v706
        %729 = vmatmul.bf16.gmra.mxu0 %v699
        %v730 = vpop.f32.mrf.mxu0
        %v731 = vadd.f32 0.0, %v730
        %v732 = vpop.f32.mrf.mxu0
        %733 = vdwg.mxu0
        %v734 = vadd.f32 %v235, %v718
        %v735 = vadd.f32 %v235, %v731
        %s736 = scalar_lea.vmem %s2, 4
        %v737 = vld [vmem:[%s736] sm:$0xf]
        %738 = vrot.lane.b32.xlu0 %v695, 127
        %v739 = vpop.permute.xlu0 %738
        %740 = vrot.lane.b32.xlu0 %v696, 127
        %v741 = vpop.permute.xlu0 %740
        %v742 = vsel %vm299, %v739, %v741
        %v744 = vsel %vm697, %v737, 0
        %v747 = vsel %vm701, %v742, 0
        %v750 = vsel %vm701, %v741, 0
        %752 = vmatpush.bf16.msra.mxu0 0
        %753 = vmatpush.bf16.msra.mxu0 0
        %754 = vmatpush.bf16.msra.mxu0 0
        %755 = vmatpush.bf16.msra.mxu0 0
        %756 = vmatpush.bf16.msra.mxu0 0
        %757 = vmatpush.bf16.msra.mxu0 0
        %758 = vmatpush.bf16.msra.mxu0 0
        %759 = vmatpush.bf16.msra.mxu0 %v747
        %760 = vmatmul.bf16.gmra.mxu0 %v744
        %v761 = vpop.f32.mrf.mxu0
        %v762 = vadd.f32 0.0, %v761
        %v763 = vpop.f32.mrf.mxu0
        %764 = vdwg.mxu0
        %765 = vmatpush.bf16.msra.mxu0 0
        %766 = vmatpush.bf16.msra.mxu0 0
        %767 = vmatpush.bf16.msra.mxu0 0
        %768 = vmatpush.bf16.msra.mxu0 0
        %769 = vmatpush.bf16.msra.mxu0 0
        %770 = vmatpush.bf16.msra.mxu0 0
        %771 = vmatpush.bf16.msra.mxu0 0
        %772 = vmatpush.bf16.msra.mxu0 %v750
        %773 = vmatmul.bf16.gmra.mxu0 %v744
        %v774 = vpop.f32.mrf.mxu0
        %v775 = vadd.f32 0.0, %v774
        %v776 = vpop.f32.mrf.mxu0
        %777 = vdwg.mxu0
        %v778 = vadd.f32 %v734, %v762
        %v779 = vadd.f32 %v735, %v775
        %s780 = scalar_lea.vmem %s2, 8
        %v781 = vld [vmem:[%s780] sm:$0xf]
        %782 = vrot.lane.b32.xlu0 %v695, 126
        %v783 = vpop.permute.xlu0 %782
        %784 = vrot.lane.b32.xlu0 %v696, 126
        %v785 = vpop.permute.xlu0 %784
        %v786 = vsel %vm349, %v783, %v785
        %v788 = vsel %vm697, %v781, 0
        %v791 = vsel %vm701, %v786, 0
        %v794 = vsel %vm701, %v785, 0
        %796 = vmatpush.bf16.msra.mxu0 0
        %797 = vmatpush.bf16.msra.mxu0 0
        %798 = vmatpush.bf16.msra.mxu0 0
        %799 = vmatpush.bf16.msra.mxu0 0
        %800 = vmatpush.bf16.msra.mxu0 0
        %801 = vmatpush.bf16.msra.mxu0 0
        %802 = vmatpush.bf16.msra.mxu0 0
        %803 = vmatpush.bf16.msra.mxu0 %v791
        %804 = vmatmul.bf16.gmra.mxu0 %v788
        %v805 = vpop.f32.mrf.mxu0
        %v806 = vadd.f32 0.0, %v805
        %v807 = vpop.f32.mrf.mxu0
        %808 = vdwg.mxu0
        %809 = vmatpush.bf16.msra.mxu0 0
        %810 = vmatpush.bf16.msra.mxu0 0
        %811 = vmatpush.bf16.msra.mxu0 0
        %812 = vmatpush.bf16.msra.mxu0 0
        %813 = vmatpush.bf16.msra.mxu0 0
        %814 = vmatpush.bf16.msra.mxu0 0
        %815 = vmatpush.bf16.msra.mxu0 0
        %816 = vmatpush.bf16.msra.mxu0 %v794
        %817 = vmatmul.bf16.gmra.mxu0 %v788
        %v818 = vpop.f32.mrf.mxu0
        %v819 = vadd.f32 0.0, %v818
        %v820 = vpop.f32.mrf.mxu0
        %821 = vdwg.mxu0
        %v822 = vadd.f32 %v778, %v806
        %v823 = vadd.f32 %v779, %v819
        %s824 = scalar_lea.vmem %s2, 12
        %v825 = vld [vmem:[%s824] sm:$0xf]
        %826 = vrot.lane.b32.xlu0 %v695, 112
        %v827 = vpop.permute.xlu0 %826
        %828 = vrot.lane.b32.xlu0 %v696, 112
        %v829 = vpop.permute.xlu0 %828
        %v830 = vsel %vm399, %v827, %v829
        %v832 = vsel %vm697, %v825, 0
        %v835 = vsel %vm701, %v830, 0
        %v838 = vsel %vm701, %v829, 0
        %840 = vmatpush.bf16.msra.mxu0 0
        %841 = vmatpush.bf16.msra.mxu0 0
        %842 = vmatpush.bf16.msra.mxu0 0
        %843 = vmatpush.bf16.msra.mxu0 0
        %844 = vmatpush.bf16.msra.mxu0 0
        %845 = vmatpush.bf16.msra.mxu0 0
        %846 = vmatpush.bf16.msra.mxu0 0
        %847 = vmatpush.bf16.msra.mxu0 %v835
        %848 = vmatmul.bf16.gmra.mxu0 %v832
        %v849 = vpop.f32.mrf.mxu0
        %v850 = vadd.f32 0.0, %v849
        %v851 = vpop.f32.mrf.mxu0
        %852 = vdwg.mxu0
        %853 = vmatpush.bf16.msra.mxu0 0
        %854 = vmatpush.bf16.msra.mxu0 0
        %855 = vmatpush.bf16.msra.mxu0 0
        %856 = vmatpush.bf16.msra.mxu0 0
        %857 = vmatpush.bf16.msra.mxu0 0
        %858 = vmatpush.bf16.msra.mxu0 0
        %859 = vmatpush.bf16.msra.mxu0 0
        %860 = vmatpush.bf16.msra.mxu0 %v838
        %861 = vmatmul.bf16.gmra.mxu0 %v832
        %v862 = vpop.f32.mrf.mxu0
        %v863 = vadd.f32 0.0, %v862
        %v864 = vpop.f32.mrf.mxu0
        %865 = vdwg.mxu0
        %v866 = vadd.f32 %v822, %v850
        %v867 = vadd.f32 %v823, %v863
        %s868 = scalar_lea.vmem %s2, 16
        %v869 = vld [vmem:[%s868] sm:$0xf]
        %870 = vrot.lane.b32.xlu0 %v695, 111
        %v871 = vpop.permute.xlu0 %870
        %872 = vrot.lane.b32.xlu0 %v696, 111
        %v873 = vpop.permute.xlu0 %872
        %v874 = vsel %vm449, %v871, %v873
        %v876 = vsel %vm697, %v869, 0
        %v879 = vsel %vm701, %v874, 0
        %v882 = vsel %vm701, %v873, 0
        %884 = vmatpush.bf16.msra.mxu0 0
        %885 = vmatpush.bf16.msra.mxu0 0
        %886 = vmatpush.bf16.msra.mxu0 0
        %887 = vmatpush.bf16.msra.mxu0 0
        %888 = vmatpush.bf16.msra.mxu0 0
        %889 = vmatpush.bf16.msra.mxu0 0
        %890 = vmatpush.bf16.msra.mxu0 0
        %891 = vmatpush.bf16.msra.mxu0 %v879
        %892 = vmatmul.bf16.gmra.mxu0 %v876
        %v893 = vpop.f32.mrf.mxu0
        %v894 = vadd.f32 0.0, %v893
        %v895 = vpop.f32.mrf.mxu0
        %896 = vdwg.mxu0
        %897 = vmatpush.bf16.msra.mxu0 0
        %898 = vmatpush.bf16.msra.mxu0 0
        %899 = vmatpush.bf16.msra.mxu0 0
        %900 = vmatpush.bf16.msra.mxu0 0
        %901 = vmatpush.bf16.msra.mxu0 0
        %902 = vmatpush.bf16.msra.mxu0 0
        %903 = vmatpush.bf16.msra.mxu0 0
        %904 = vmatpush.bf16.msra.mxu0 %v882
        %905 = vmatmul.bf16.gmra.mxu0 %v876
        %v906 = vpop.f32.mrf.mxu0
        %v907 = vadd.f32 0.0, %v906
        %v908 = vpop.f32.mrf.mxu0
        %909 = vdwg.mxu0
        %v910 = vadd.f32 %v866, %v894
        %v911 = vadd.f32 %v867, %v907
        %s912 = scalar_lea.vmem %s2, 20
        %v913 = vld [vmem:[%s912] sm:$0xf]
        %914 = vrot.lane.b32.xlu0 %v695, 110
        %v915 = vpop.permute.xlu0 %914
        %916 = vrot.lane.b32.xlu0 %v696, 110
        %v917 = vpop.permute.xlu0 %916
        %v918 = vsel %vm499, %v915, %v917
        %v920 = vsel %vm697, %v913, 0
        %v923 = vsel %vm701, %v918, 0
        %v926 = vsel %vm701, %v917, 0
        %928 = vmatpush.bf16.msra.mxu0 0
        %929 = vmatpush.bf16.msra.mxu0 0
        %930 = vmatpush.bf16.msra.mxu0 0
        %931 = vmatpush.bf16.msra.mxu0 0
        %932 = vmatpush.bf16.msra.mxu0 0
        %933 = vmatpush.bf16.msra.mxu0 0
        %934 = vmatpush.bf16.msra.mxu0 0
        %935 = vmatpush.bf16.msra.mxu0 %v923
        %936 = vmatmul.bf16.gmra.mxu0 %v920
        %v937 = vpop.f32.mrf.mxu0
        %v938 = vadd.f32 0.0, %v937
        %v939 = vpop.f32.mrf.mxu0
        %940 = vdwg.mxu0
        %941 = vmatpush.bf16.msra.mxu0 0
        %942 = vmatpush.bf16.msra.mxu0 0
        %943 = vmatpush.bf16.msra.mxu0 0
        %944 = vmatpush.bf16.msra.mxu0 0
        %945 = vmatpush.bf16.msra.mxu0 0
        %946 = vmatpush.bf16.msra.mxu0 0
        %947 = vmatpush.bf16.msra.mxu0 0
        %948 = vmatpush.bf16.msra.mxu0 %v926
        %949 = vmatmul.bf16.gmra.mxu0 %v920
        %v950 = vpop.f32.mrf.mxu0
        %v951 = vadd.f32 0.0, %v950
        %v952 = vpop.f32.mrf.mxu0
        %953 = vdwg.mxu0
        %v954 = vadd.f32 %v910, %v938
        %v955 = vadd.f32 %v911, %v951
        %s956 = scalar_lea.vmem %s2, 24
        %v957 = vld [vmem:[%s956] sm:$0xf]
        %958 = vrot.lane.b32.xlu0 %v695, 96
        %v959 = vpop.permute.xlu0 %958
        %960 = vrot.lane.b32.xlu0 %v696, 96
        %v961 = vpop.permute.xlu0 %960
        %v962 = vsel %vm549, %v959, %v961
        %v964 = vsel %vm697, %v957, 0
        %v967 = vsel %vm701, %v962, 0
        %v970 = vsel %vm701, %v961, 0
        %972 = vmatpush.bf16.msra.mxu0 0
        %973 = vmatpush.bf16.msra.mxu0 0
        %974 = vmatpush.bf16.msra.mxu0 0
        %975 = vmatpush.bf16.msra.mxu0 0
        %976 = vmatpush.bf16.msra.mxu0 0
        %977 = vmatpush.bf16.msra.mxu0 0
        %978 = vmatpush.bf16.msra.mxu0 0
        %979 = vmatpush.bf16.msra.mxu0 %v967
        %980 = vmatmul.bf16.gmra.mxu0 %v964
        %v981 = vpop.f32.mrf.mxu0
        %v982 = vadd.f32 0.0, %v981
        %v983 = vpop.f32.mrf.mxu0
        %984 = vdwg.mxu0
        %985 = vmatpush.bf16.msra.mxu0 0
        %986 = vmatpush.bf16.msra.mxu0 0
        %987 = vmatpush.bf16.msra.mxu0 0
        %988 = vmatpush.bf16.msra.mxu0 0
        %989 = vmatpush.bf16.msra.mxu0 0
        %990 = vmatpush.bf16.msra.mxu0 0
        %991 = vmatpush.bf16.msra.mxu0 0
        %992 = vmatpush.bf16.msra.mxu0 %v970
        %993 = vmatmul.bf16.gmra.mxu0 %v964
        %v994 = vpop.f32.mrf.mxu0
        %v995 = vadd.f32 0.0, %v994
        %v996 = vpop.f32.mrf.mxu0
        %997 = vdwg.mxu0
        %v998 = vadd.f32 %v954, %v982
        %v999 = vadd.f32 %v955, %v995
        %s1000 = scalar_lea.vmem %s2, 28
        %v1001 = vld [vmem:[%s1000] sm:$0xf]
        %1002 = vrot.lane.b32.xlu0 %v695, 95
        %v1003 = vpop.permute.xlu0 %1002
        %1004 = vrot.lane.b32.xlu0 %v696, 95
        %v1005 = vpop.permute.xlu0 %1004
        %v1006 = vsel %vm599, %v1003, %v1005
        %v1008 = vsel %vm697, %v1001, 0
        %v1011 = vsel %vm701, %v1006, 0
        %v1014 = vsel %vm701, %v1005, 0
        %1016 = vmatpush.bf16.msra.mxu0 0
        %1017 = vmatpush.bf16.msra.mxu0 0
        %1018 = vmatpush.bf16.msra.mxu0 0
        %1019 = vmatpush.bf16.msra.mxu0 0
        %1020 = vmatpush.bf16.msra.mxu0 0
        %1021 = vmatpush.bf16.msra.mxu0 0
        %1022 = vmatpush.bf16.msra.mxu0 0
        %1023 = vmatpush.bf16.msra.mxu0 %v1011
        %1024 = vmatmul.bf16.gmra.mxu0 %v1008
        %v1025 = vpop.f32.mrf.mxu0
        %v1026 = vadd.f32 0.0, %v1025
        %v1027 = vpop.f32.mrf.mxu0
        %1028 = vdwg.mxu0
        %1029 = vmatpush.bf16.msra.mxu0 0
        %1030 = vmatpush.bf16.msra.mxu0 0
        %1031 = vmatpush.bf16.msra.mxu0 0
        %1032 = vmatpush.bf16.msra.mxu0 0
        %1033 = vmatpush.bf16.msra.mxu0 0
        %1034 = vmatpush.bf16.msra.mxu0 0
        %1035 = vmatpush.bf16.msra.mxu0 0
        %1036 = vmatpush.bf16.msra.mxu0 %v1014
        %1037 = vmatmul.bf16.gmra.mxu0 %v1008
        %v1038 = vpop.f32.mrf.mxu0
        %v1039 = vadd.f32 0.0, %v1038
        %v1040 = vpop.f32.mrf.mxu0
        %1041 = vdwg.mxu0
        %v1042 = vadd.f32 %v998, %v1026
        %v1043 = vadd.f32 %v999, %v1039
        %s1044 = scalar_lea.vmem %s2, 32
        %v1045 = vld [vmem:[%s1044] sm:$0xf]
        %1046 = vrot.lane.b32.xlu0 %v695, 94
        %v1047 = vpop.permute.xlu0 %1046
        %1048 = vrot.lane.b32.xlu0 %v696, 94
        %v1049 = vpop.permute.xlu0 %1048
        %v1050 = vsel %vm649, %v1047, %v1049
        %v1052 = vsel %vm697, %v1045, 0
        %v1055 = vsel %vm701, %v1050, 0
        %v1058 = vsel %vm701, %v1049, 0
        %1060 = vmatpush.bf16.msra.mxu0 0
        %1061 = vmatpush.bf16.msra.mxu0 0
        %1062 = vmatpush.bf16.msra.mxu0 0
        %1063 = vmatpush.bf16.msra.mxu0 0
        %1064 = vmatpush.bf16.msra.mxu0 0
        %1065 = vmatpush.bf16.msra.mxu0 0
        %1066 = vmatpush.bf16.msra.mxu0 0
        %1067 = vmatpush.bf16.msra.mxu0 %v1055
        %1068 = vmatmul.bf16.gmra.mxu0 %v1052
        %v1069 = vpop.f32.mrf.mxu0
        %v1070 = vadd.f32 0.0, %v1069
        %v1071 = vpop.f32.mrf.mxu0
        %1072 = vdwg.mxu0
        %1073 = vmatpush.bf16.msra.mxu0 0
        %1074 = vmatpush.bf16.msra.mxu0 0
        %1075 = vmatpush.bf16.msra.mxu0 0
        %1076 = vmatpush.bf16.msra.mxu0 0
        %1077 = vmatpush.bf16.msra.mxu0 0
        %1078 = vmatpush.bf16.msra.mxu0 0
        %1079 = vmatpush.bf16.msra.mxu0 0
        %1080 = vmatpush.bf16.msra.mxu0 %v1058
        %1081 = vmatmul.bf16.gmra.mxu0 %v1052
        %v1082 = vpop.f32.mrf.mxu0
        %v1083 = vadd.f32 0.0, %v1082
        %v1084 = vpop.f32.mrf.mxu0
        %1085 = vdwg.mxu0
        %v1086 = vadd.f32 %v1042, %v1070
        %v1087 = vadd.f32 %v1043, %v1083
        %1088 = vst [vmem:[#allocation1] ss:$4 sm:$0xff] %v245
        %v1089 = vld.sshfl [vmem:[#allocation1] sm:$0xff pattern:$0x73625140]
        %v1091 = vld.sshfl [vmem:[#allocation1 + $0x8] sm:$0xff pattern:$0x73625140]
        %1093 = vrot.lane.b32.xlu0 %v1089, 94
        %v1094 = vpop.permute.xlu0 %1093
        %1095 = vrot.lane.b32.xlu0 %v1091, 94
        %v1096 = vpop.permute.xlu0 %1095
        %v1097 = vsel %vm649, %v1094, %v1096
        %v1099 = vsel %vm251, %v244, 0
        %v1102 = vsel %vm255, %v1097, 0
        %v1105 = vsel %vm255, %v1096, 0
        %1107 = vmatpush.bf16.msra.mxu0 0
        %1108 = vmatpush.bf16.msra.mxu0 0
        %1109 = vmatpush.bf16.msra.mxu0 0
        %1110 = vmatpush.bf16.msra.mxu0 0
        %1111 = vmatpush.bf16.msra.mxu0 0
        %1112 = vmatpush.bf16.msra.mxu0 0
        %1113 = vmatpush.bf16.msra.mxu0 0
        %1114 = vmatpush.bf16.msra.mxu0 %v1102
        %1115 = vmatmul.bf16.gmra.mxu0 %v1099
        %v1116 = vpop.f32.mrf.mxu0
        %v1117 = vadd.f32 0.0, %v1116
        %v1118 = vpop.f32.mrf.mxu0
        %1119 = vdwg.mxu0
        %1120 = vmatpush.bf16.msra.mxu0 0
        %1121 = vmatpush.bf16.msra.mxu0 0
        %1122 = vmatpush.bf16.msra.mxu0 0
        %1123 = vmatpush.bf16.msra.mxu0 0
        %1124 = vmatpush.bf16.msra.mxu0 0
        %1125 = vmatpush.bf16.msra.mxu0 0
        %1126 = vmatpush.bf16.msra.mxu0 0
        %1127 = vmatpush.bf16.msra.mxu0 %v1105
        %1128 = vmatmul.bf16.gmra.mxu0 %v1099
        %v1129 = vpop.f32.mrf.mxu0
        %v1130 = vadd.f32 0.0, %v1129
        %v1131 = vpop.f32.mrf.mxu0
        %1132 = vdwg.mxu0
        %v1133 = vadd.f32 %v242, %v1117
        %v1134 = vadd.f32 %v242, %v1130
        %v1135 = vadd.f32 %v1086, %v1133
        %v1136 = vadd.f32 %v1087, %v1134
        %v1137 = vmax.f32 %v1135, 0.0
        %v1138 = vmax.f32 %v1136, 0.0
        %1139 = vst [vmem:[%s217] sm:$0xff] %v1137
        %vm1140 = vcmask 490496
        %1141 = vst.msk [vmem:[%s217 + $0x8] sm:$0xff] %vm1140, %v1138
        %s1142 = sand.u32 %s137, 1
        %s1143 = scalar_lea.sflag [#allocation3], %s1142
        %s1144 = sand.u32 %s137, 1
        %s1145 = smul.addr %s1144, 16
        %s1146 = scalar_lea.vmem [#allocation2], %s1145
        // Predicated region
        $region41: #{tpu_custom_call.1} parent=39 // pred_check
          %p1147 = pneg %p147
        $region42: #{tpu_custom_call.1} parent=39 // pred_check_branch
          %1149 = sbr.rel (%p1147) target = $region44
        $region43: #{tpu_custom_call.1} parent=39 // pred_region
          %1151 = vsyncadd %s1143, 0
          %s1152 = smul.addr %s19, 2
          %s1153 = smul.addr %s1152, 8
          %s1154 = scalar_lea.hbm %s5, %s1153
          %s1156 = sshll.u32 %s1146, 4
          %s1157 = int_to_ptr.vmem [resolvable:$true] %s1156
          %s1158 = sshll.u32 %s1154, 4
          %s1159 = int_to_ptr.hbm [resolvable:$true] %s1158
          %1161 = dma.vmem_to_hbm [thread:$0]  %s1157, 256, %s1159, %s1143
        $region44: #{tpu_custom_call.1} parent=39 // pred_fallthru
          _
      $region40: #{tpu_custom_call.1} parent=5 // pred_fallthru
        _
      %p1162 = scmp.le.s32.totalorder 2, %s14
      // Predicated region
      $region45: #{tpu_custom_call.1} parent=5 // pred_check
        %p1163 = pneg %p1162
      $region46: #{tpu_custom_call.1} parent=5 // pred_check_branch
        %1165 = sbr.rel (%p1163) target = $region48
      $region47: #{tpu_custom_call.1} parent=5 // pred_region
        %s1166 = ssub.s32 %s14, 2
        // Predicated region
        $region49: #{tpu_custom_call.1} parent=47 // pred_check
          %p1167 = pneg %p153
        $region50: #{tpu_custom_call.1} parent=47 // pred_check_branch
          %1169 = sbr.rel (%p1167) target = $region52
        $region51: #{tpu_custom_call.1} parent=47 // pred_region
          %s1170 = sand.u32 %s138, 1
          %s1171 = scalar_lea.sflag [#allocation3], %s1170
          %s1172 = sand.u32 %s138, 1
          %s1173 = smul.addr %s1172, 16
          %s1174 = scalar_lea.vmem [#allocation2], %s1173
          %1176 = dma.done %s1171, 256
        $region52: #{tpu_custom_call.1} parent=47 // pred_fallthru
          _
      $region48: #{tpu_custom_call.1} parent=5 // pred_fallthru
        _
    $region6: #{tpu_custom_call.1} parent=1 // loop_footer
      %s18 = sadd.s32 1, %s14
    $region7: #{tpu_custom_call.1} parent=1 // loop_footer_branch
      %13 = sbr.rel target = $region3
    $region8: #{tpu_custom_call.1} parent=1 // loop_exit
      _
    %1177 = vsyncpa [#allocation3], 1
    %s1178 = scalar_lea.sflag [#allocation3], 1
    %1179 = vsyncpa %s1178, 1

</llo_original>
